<compile_context>
chip_gen: v7x
topology: tpu7x:2x2x1
jax: 0.10.0
libtpu: 0.0.40
codegen_flags: <defaults>
</compile_context>

<pallas_src>
import functools

import jax
import jax.numpy as jnp
from jax.experimental import pallas as pl
from jax.experimental.pallas import tpu as pltpu


def _round_up(x: int, m: int) -> int:
    return (x + m - 1) // m * m


def _fused_gin_kernel(a_ref, x_ref, m_ref, p_ref, *rest, nconvs: int,
                      hp: int, eps_bn: float):
    """Fused GIN forward: nconvs x (aggregate + MLP [+ ReLU + BN]) + pooling.

    rest = 6 * nconvs layer-param refs (w1, b1, w2, b2, gamma, beta), then o_ref.
    All operands are full-array VMEM blocks; everything stays on-chip.
    """
    o_ref = rest[-1]
    layer_refs = rest[:-1]

    a = a_ref[...]          # [Np, Np] bf16, diagonal already holds (1 + eps_gin)
    h = x_ref[...]          # [Np, Fp] bf16 activations (node features)
    m = m_ref[...]          # [1, Np]  f32, 1/N on real rows, 0 on padding
    pmat = p_ref[...]       # [G, Np]  f32 mean-pool matrix (0 on padded cols)

    for l in range(nconvs):
        w1, b1, w2, b2, gamma, beta = layer_refs[6 * l:6 * l + 6]

        # Neighbor aggregation + self term in one MXU matmul: (A + (1+eps)I) @ h
        agg = jnp.dot(a, h, preferred_element_type=jnp.float32)

        # MLP: Linear -> ReLU -> Linear (bf16 operands, f32 accumulation)
        z = jnp.dot(agg.astype(jnp.bfloat16), w1[...],
                    preferred_element_type=jnp.float32) + b1[...]
        z = jnp.maximum(z, 0.0)
        z = jnp.dot(z.astype(jnp.bfloat16), w2[...],
                    preferred_element_type=jnp.float32) + b2[...]

        if l < nconvs - 1:
            # ReLU + BatchNorm1d (training-mode batch stats, biased variance).
            # Stats as MXU matmuls with the masked (1/N) row vector, so padded
            # rows are excluded and the VPU/XLU stay free.
            z = jnp.maximum(z, 0.0)
            mean = jnp.dot(m, z, preferred_element_type=jnp.float32)       # [1, Hp]
            ex2 = jnp.dot(m, z * z, preferred_element_type=jnp.float32)    # [1, Hp]
            var = jnp.maximum(ex2 - mean * mean, 0.0)
            z = (z - mean) * jax.lax.rsqrt(var + eps_bn) * gamma[...] + beta[...]

        # Fused global mean pooling for this layer -> lane-dense 128-wide slice.
        o_ref[:, l * hp:(l + 1) * hp] = jnp.dot(
            pmat, z, preferred_element_type=jnp.float32)

        # Next layer consumes the (normalized) activations in bf16.
        h = z.astype(jnp.bfloat16)


def _full_spec(shape):
    nd = len(shape)
    return pl.BlockSpec(shape, lambda i, _nd=nd: (0,) * _nd)


def gin_forward(x, edge_index, batch, params, num_graphs, *, pooling="mean",
                eps_gin=0.0, eps_bn=1e-5):
    n, f = x.shape
    nconvs = len(params)
    hidden = params[0][0].shape[1]

    np_ = _round_up(max(n, 8), 128)       # padded node count (lane/sublane dense)
    fp = _round_up(max(f, 1), 128)        # padded input feature dim
    hp = _round_up(max(hidden, 1), 128)   # padded hidden dim

    src, dst = edge_index[0], edge_index[1]

    # --- glue (wrapper-side, XLA): dense adjacency with the self term folded in.
    a = jnp.zeros((np_, np_), jnp.float32).at[dst, src].add(1.0)
    idx = jnp.arange(n)
    a = a.at[idx, idx].add(1.0 + eps_gin)          # (1+eps)*x folded into A'
    a = a.astype(jnp.bfloat16)

    # Padded node features.
    x_pad = jnp.zeros((np_, fp), jnp.float32).at[:n, :f].set(x).astype(jnp.bfloat16)

    # Masked (1/N) row vector for BatchNorm batch statistics.
    m = jnp.zeros((1, np_), jnp.float32).at[0, :n].set(1.0 / float(n))

    # Pooling matrix [G, Np] (mean or sum), zero on padded node columns.
    onehot = (batch[None, :] == jnp.arange(num_graphs)[:, None]).astype(jnp.float32)
    if pooling == "mean":
        p_real = onehot / jnp.maximum(onehot.sum(axis=1, keepdims=True), 1.0)
    else:  # 'sum'
        p_real = onehot
    p = jnp.zeros((num_graphs, np_), jnp.float32).at[:, :n].set(p_real)

    # Zero-pad all layer parameters to lane-dense shapes.
    def pad_w(w, rows, cols):
        out = jnp.zeros((rows, cols), jnp.float32)
        out = out.at[:w.shape[0], :w.shape[1]].set(w)
        return out.astype(jnp.bfloat16)

    def pad_row(v, cols):
        out = jnp.zeros((1, cols), jnp.float32)
        return out.at[:, :v.shape[1]].set(v)

    flat_params = []
    for i, (w1, b1, w2, b2, gamma, beta) in enumerate(params):
        din_p = fp if i == 0 else hp
        flat_params += [
            pad_w(w1, din_p, hp), pad_row(b1, hp),
            pad_w(w2, hp, hp), pad_row(b2, hp),
            pad_row(gamma, hp), pad_row(beta, hp),
        ]

    inputs = [a, x_pad, m, p] + flat_params
    out_shape = jax.ShapeDtypeStruct((num_graphs, nconvs * hp), jnp.float32)

    # Explicit scoped-VMEM budget sized from the actual operand footprint
    # (generous headroom for double-buffering + in-kernel temporaries).
    total_bytes = sum(int(t.size) * t.dtype.itemsize for t in inputs)
    total_bytes += int(num_graphs) * nconvs * hp * 4
    vmem_limit = int(min(64 * 1024 * 1024, max(8 * 1024 * 1024, 8 * total_bytes)))

    kernel = functools.partial(_fused_gin_kernel, nconvs=nconvs, hp=hp,
                               eps_bn=eps_bn)

    out_pad = pl.pallas_call(
        kernel,
        out_shape=out_shape,
        grid=(1,),
        in_specs=[_full_spec(t.shape) for t in inputs],
        out_specs=pl.BlockSpec((num_graphs, nconvs * hp), lambda i: (0, 0)),
        compiler_params=pltpu.CompilerParams(
            dimension_semantics=("arbitrary",),
            vmem_limit_bytes=vmem_limit),
    )(*inputs)

    # Slice out the real hidden columns of each layer and concatenate.
    outs = [out_pad[:, l * hp:l * hp + hidden] for l in range(nconvs)]
    return jnp.concatenate(outs, axis=1)


def init_params(key, input_dim, hidden_dim, nconvs):
    params = []
    keys = jax.random.split(key, 4 * nconvs)
    ki = iter(keys)
    for i in range(nconvs):
        din = input_dim if i == 0 else hidden_dim
        bound1 = 1.0 / float(din) ** 0.5
        bound2 = 1.0 / float(hidden_dim) ** 0.5
        w1 = jax.random.uniform(next(ki), (din, hidden_dim), jnp.float32, -bound1, bound1)
        b1 = jax.random.uniform(next(ki), (1, hidden_dim), jnp.float32, -bound1, bound1)
        w2 = jax.random.uniform(next(ki), (hidden_dim, hidden_dim), jnp.float32, -bound2, bound2)
        b2 = jax.random.uniform(next(ki), (1, hidden_dim), jnp.float32, -bound2, bound2)
        gamma = jnp.ones((1, hidden_dim), jnp.float32)
        beta = jnp.zeros((1, hidden_dim), jnp.float32)
        params.append((w1, b1, w2, b2, gamma, beta))
    return params


if __name__ == "__main__":
    N, INPUT_DIM, HIDDEN_DIM, NCONVS, G = 64, 16, 32, 3, 4
    E = 256

    key = jax.random.PRNGKey(0)
    k_x, k_src, k_dst, k_par = jax.random.split(key, 4)

    x = jax.random.normal(k_x, (N, INPUT_DIM), dtype=jnp.float32)
    src = jax.random.randint(k_src, (E,), 0, N)
    dst = jax.random.randint(k_dst, (E,), 0, N)
    edge_index = jnp.stack([src, dst])                   # [2, E]
    batch = jnp.repeat(jnp.arange(G), N // G)            # [N]

    params = init_params(k_par, INPUT_DIM, HIDDEN_DIM, NCONVS)

    out = gin_forward(x, edge_index, batch, params, G, pooling="mean")
    out = jax.block_until_ready(out)
    assert out.shape == (G, NCONVS * HIDDEN_DIM)
    assert jnp.all(jnp.isfinite(out))
    print("KERNEL_OK")
</pallas_src>

<mosaic_0001>
module attributes {stable_mosaic.version = 11 : i64} {
  func.func @_fused_gin_kernel(%arg0: i32, %arg1: memref<128x128xbf16, #tpu.memory_space<vmem>>, %arg2: memref<128x128xbf16, #tpu.memory_space<vmem>>, %arg3: memref<1x128xf32, #tpu.memory_space<vmem>>, %arg4: memref<4x128xf32, #tpu.memory_space<vmem>>, %arg5: memref<128x128xbf16, #tpu.memory_space<vmem>>, %arg6: memref<1x128xf32, #tpu.memory_space<vmem>>, %arg7: memref<128x128xbf16, #tpu.memory_space<vmem>>, %arg8: memref<1x128xf32, #tpu.memory_space<vmem>>, %arg9: memref<1x128xf32, #tpu.memory_space<vmem>>, %arg10: memref<1x128xf32, #tpu.memory_space<vmem>>, %arg11: memref<128x128xbf16, #tpu.memory_space<vmem>>, %arg12: memref<1x128xf32, #tpu.memory_space<vmem>>, %arg13: memref<128x128xbf16, #tpu.memory_space<vmem>>, %arg14: memref<1x128xf32, #tpu.memory_space<vmem>>, %arg15: memref<1x128xf32, #tpu.memory_space<vmem>>, %arg16: memref<1x128xf32, #tpu.memory_space<vmem>>, %arg17: memref<128x128xbf16, #tpu.memory_space<vmem>>, %arg18: memref<1x128xf32, #tpu.memory_space<vmem>>, %arg19: memref<128x128xbf16, #tpu.memory_space<vmem>>, %arg20: memref<1x128xf32, #tpu.memory_space<vmem>>, %arg21: memref<1x128xf32, #tpu.memory_space<vmem>>, %arg22: memref<1x128xf32, #tpu.memory_space<vmem>>, %arg23: memref<4x384xf32, #tpu.memory_space<vmem>>) attributes {dimension_semantics = [#tpu.dimension_semantics<arbitrary>], iteration_bounds = array<i64: 1>, scalar_prefetch = 0 : i64, scratch_operands = 0 : i64, tpu.core_type = #tpu.core_type<tc>, window_params = [{pipeline_mode = #tpu.pipeline_mode<synchronous>, transform_indices = @transform_0, window_bounds = array<i64: 128, 128>}, {pipeline_mode = #tpu.pipeline_mode<synchronous>, transform_indices = @transform_1, window_bounds = array<i64: 128, 128>}, {pipeline_mode = #tpu.pipeline_mode<synchronous>, transform_indices = @transform_2, window_bounds = array<i64: 1, 128>}, {pipeline_mode = #tpu.pipeline_mode<synchronous>, transform_indices = @transform_3, window_bounds = array<i64: 4, 128>}, {pipeline_mode = #tpu.pipeline_mode<synchronous>, transform_indices = @transform_4, window_bounds = array<i64: 128, 128>}, {pipeline_mode = #tpu.pipeline_mode<synchronous>, transform_indices = @transform_5, window_bounds = array<i64: 1, 128>}, {pipeline_mode = #tpu.pipeline_mode<synchronous>, transform_indices = @transform_6, window_bounds = array<i64: 128, 128>}, {pipeline_mode = #tpu.pipeline_mode<synchronous>, transform_indices = @transform_7, window_bounds = array<i64: 1, 128>}, {pipeline_mode = #tpu.pipeline_mode<synchronous>, transform_indices = @transform_8, window_bounds = array<i64: 1, 128>}, {pipeline_mode = #tpu.pipeline_mode<synchronous>, transform_indices = @transform_9, window_bounds = array<i64: 1, 128>}, {pipeline_mode = #tpu.pipeline_mode<synchronous>, transform_indices = @transform_10, window_bounds = array<i64: 128, 128>}, {pipeline_mode = #tpu.pipeline_mode<synchronous>, transform_indices = @transform_11, window_bounds = array<i64: 1, 128>}, {pipeline_mode = #tpu.pipeline_mode<synchronous>, transform_indices = @transform_12, window_bounds = array<i64: 128, 128>}, {pipeline_mode = #tpu.pipeline_mode<synchronous>, transform_indices = @transform_13, window_bounds = array<i64: 1, 128>}, {pipeline_mode = #tpu.pipeline_mode<synchronous>, transform_indices = @transform_14, window_bounds = array<i64: 1, 128>}, {pipeline_mode = #tpu.pipeline_mode<synchronous>, transform_indices = @transform_15, window_bounds = array<i64: 1, 128>}, {pipeline_mode = #tpu.pipeline_mode<synchronous>, transform_indices = @transform_16, window_bounds = array<i64: 128, 128>}, {pipeline_mode = #tpu.pipeline_mode<synchronous>, transform_indices = @transform_17, window_bounds = array<i64: 1, 128>}, {pipeline_mode = #tpu.pipeline_mode<synchronous>, transform_indices = @transform_18, window_bounds = array<i64: 128, 128>}, {pipeline_mode = #tpu.pipeline_mode<synchronous>, transform_indices = @transform_19, window_bounds = array<i64: 1, 128>}, {pipeline_mode = #tpu.pipeline_mode<synchronous>, transform_indices = @transform_20, window_bounds = array<i64: 1, 128>}, {pipeline_mode = #tpu.pipeline_mode<synchronous>, transform_indices = @transform_21, window_bounds = array<i64: 1, 128>}, {pipeline_mode = #tpu.pipeline_mode<synchronous>, transform_indices = @transform_22, window_bounds = array<i64: 4, 384>}]} {
    %c0 = arith.constant 0 : index
    %c0_0 = arith.constant 0 : index
    %0 = vector.load %arg1[%c0, %c0_0] : memref<128x128xbf16, #tpu.memory_space<vmem>>, vector<128x128xbf16>
    %c0_1 = arith.constant 0 : index
    %c0_2 = arith.constant 0 : index
    %1 = vector.load %arg2[%c0_1, %c0_2] : memref<128x128xbf16, #tpu.memory_space<vmem>>, vector<128x128xbf16>
    %c0_3 = arith.constant 0 : index
    %c0_4 = arith.constant 0 : index
    %2 = vector.load %arg3[%c0_3, %c0_4] : memref<1x128xf32, #tpu.memory_space<vmem>>, vector<1x128xf32>
    %c0_5 = arith.constant 0 : index
    %c0_6 = arith.constant 0 : index
    %3 = vector.load %arg4[%c0_5, %c0_6] : memref<4x128xf32, #tpu.memory_space<vmem>>, vector<4x128xf32>
    %cst = arith.constant dense<0.000000e+00> : vector<128x128xf32>
    %4 = tpu.matmul %0, %1, %cst {dimension_numbers = #tpu.dot_dimension_numbers<[1], [0], [0], [1], [0, 0, 1, 1], [], []>} : vector<128x128xbf16>, vector<128x128xbf16>, vector<128x128xf32> -> vector<128x128xf32>
    %5 = arith.truncf %4 : vector<128x128xf32> to vector<128x128xbf16>
    %c0_7 = arith.constant 0 : index
    %c0_8 = arith.constant 0 : index
    %6 = vector.load %arg5[%c0_7, %c0_8] : memref<128x128xbf16, #tpu.memory_space<vmem>>, vector<128x128xbf16>
    %cst_9 = arith.constant dense<0.000000e+00> : vector<128x128xf32>
    %7 = tpu.matmul %5, %6, %cst_9 {dimension_numbers = #tpu.dot_dimension_numbers<[1], [0], [0], [1], [0, 0, 1, 1], [], []>} : vector<128x128xbf16>, vector<128x128xbf16>, vector<128x128xf32> -> vector<128x128xf32>
    %c0_10 = arith.constant 0 : index
    %c0_11 = arith.constant 0 : index
    %8 = vector.load %arg6[%c0_10, %c0_11] : memref<1x128xf32, #tpu.memory_space<vmem>>, vector<1x128xf32>
    %9 = vector.broadcast %8 : vector<1x128xf32> to vector<128x128xf32>
    %10 = arith.addf %7, %9 : vector<128x128xf32>
    %cst_12 = arith.constant 0.000000e+00 : f32
    %11 = vector.broadcast %cst_12 : f32 to vector<128x128xf32>
    %12 = arith.maximumf %10, %11 : vector<128x128xf32>
    %13 = arith.truncf %12 : vector<128x128xf32> to vector<128x128xbf16>
    %c0_13 = arith.constant 0 : index
    %c0_14 = arith.constant 0 : index
    %14 = vector.load %arg7[%c0_13, %c0_14] : memref<128x128xbf16, #tpu.memory_space<vmem>>, vector<128x128xbf16>
    %cst_15 = arith.constant dense<0.000000e+00> : vector<128x128xf32>
    %15 = tpu.matmul %13, %14, %cst_15 {dimension_numbers = #tpu.dot_dimension_numbers<[1], [0], [0], [1], [0, 0, 1, 1], [], []>} : vector<128x128xbf16>, vector<128x128xbf16>, vector<128x128xf32> -> vector<128x128xf32>
    %c0_16 = arith.constant 0 : index
    %c0_17 = arith.constant 0 : index
    %16 = vector.load %arg8[%c0_16, %c0_17] : memref<1x128xf32, #tpu.memory_space<vmem>>, vector<1x128xf32>
    %17 = vector.broadcast %16 : vector<1x128xf32> to vector<128x128xf32>
    %18 = arith.addf %15, %17 : vector<128x128xf32>
    %cst_18 = arith.constant 0.000000e+00 : f32
    %19 = vector.broadcast %cst_18 : f32 to vector<128x128xf32>
    %20 = arith.maximumf %18, %19 : vector<128x128xf32>
    %cst_19 = arith.constant dense<0.000000e+00> : vector<1x128xf32>
    %21 = tpu.matmul %2, %20, %cst_19 {dimension_numbers = #tpu.dot_dimension_numbers<[1], [0], [0], [1], [0, 0, 1, 1], [], []>} : vector<1x128xf32>, vector<128x128xf32>, vector<1x128xf32> -> vector<1x128xf32>
    %22 = arith.mulf %20, %20 : vector<128x128xf32>
    %cst_20 = arith.constant dense<0.000000e+00> : vector<1x128xf32>
    %23 = tpu.matmul %2, %22, %cst_20 {dimension_numbers = #tpu.dot_dimension_numbers<[1], [0], [0], [1], [0, 0, 1, 1], [], []>} : vector<1x128xf32>, vector<128x128xf32>, vector<1x128xf32> -> vector<1x128xf32>
    %24 = arith.mulf %21, %21 : vector<1x128xf32>
    %25 = arith.subf %23, %24 : vector<1x128xf32>
    %cst_21 = arith.constant 0.000000e+00 : f32
    %26 = vector.broadcast %cst_21 : f32 to vector<1x128xf32>
    %27 = arith.maximumf %25, %26 : vector<1x128xf32>
    %28 = vector.broadcast %21 : vector<1x128xf32> to vector<128x128xf32>
    %29 = arith.subf %20, %28 : vector<128x128xf32>
    %cst_22 = arith.constant 9.99999974E-6 : f32
    %30 = vector.broadcast %cst_22 : f32 to vector<1x128xf32>
    %31 = arith.addf %27, %30 : vector<1x128xf32>
    %32 = math.rsqrt %31 : vector<1x128xf32>
    %33 = vector.broadcast %32 : vector<1x128xf32> to vector<128x128xf32>
    %34 = arith.mulf %29, %33 : vector<128x128xf32>
    %c0_23 = arith.constant 0 : index
    %c0_24 = arith.constant 0 : index
    %35 = vector.load %arg9[%c0_23, %c0_24] : memref<1x128xf32, #tpu.memory_space<vmem>>, vector<1x128xf32>
    %36 = vector.broadcast %35 : vector<1x128xf32> to vector<128x128xf32>
    %37 = arith.mulf %34, %36 : vector<128x128xf32>
    %c0_25 = arith.constant 0 : index
    %c0_26 = arith.constant 0 : index
    %38 = vector.load %arg10[%c0_25, %c0_26] : memref<1x128xf32, #tpu.memory_space<vmem>>, vector<1x128xf32>
    %39 = vector.broadcast %38 : vector<1x128xf32> to vector<128x128xf32>
    %40 = arith.addf %37, %39 : vector<128x128xf32>
    %cst_27 = arith.constant dense<0.000000e+00> : vector<4x128xf32>
    %41 = tpu.matmul %3, %40, %cst_27 {dimension_numbers = #tpu.dot_dimension_numbers<[1], [0], [0], [1], [0, 0, 1, 1], [], []>} : vector<4x128xf32>, vector<128x128xf32>, vector<4x128xf32> -> vector<4x128xf32>
    %c0_28 = arith.constant 0 : index
    %c0_29 = arith.constant 0 : index
    %42 = vector.load %arg23[%c0_28, %c0_29] : memref<4x384xf32, #tpu.memory_space<vmem>>, vector<4x128xf32>
    tpu.vector_store %arg23[%c0_28, %c0_29], %41 {strides = array<i32>} : memref<4x384xf32, #tpu.memory_space<vmem>>, vector<4x128xf32>,
    %43 = arith.truncf %40 : vector<128x128xf32> to vector<128x128xbf16>
    %cst_30 = arith.constant dense<0.000000e+00> : vector<128x128xf32>
    %44 = tpu.matmul %0, %43, %cst_30 {dimension_numbers = #tpu.dot_dimension_numbers<[1], [0], [0], [1], [0, 0, 1, 1], [], []>} : vector<128x128xbf16>, vector<128x128xbf16>, vector<128x128xf32> -> vector<128x128xf32>
    %45 = arith.truncf %44 : vector<128x128xf32> to vector<128x128xbf16>
    %c0_31 = arith.constant 0 : index
    %c0_32 = arith.constant 0 : index
    %46 = vector.load %arg11[%c0_31, %c0_32] : memref<128x128xbf16, #tpu.memory_space<vmem>>, vector<128x128xbf16>
    %cst_33 = arith.constant dense<0.000000e+00> : vector<128x128xf32>
    %47 = tpu.matmul %45, %46, %cst_33 {dimension_numbers = #tpu.dot_dimension_numbers<[1], [0], [0], [1], [0, 0, 1, 1], [], []>} : vector<128x128xbf16>, vector<128x128xbf16>, vector<128x128xf32> -> vector<128x128xf32>
    %c0_34 = arith.constant 0 : index
    %c0_35 = arith.constant 0 : index
    %48 = vector.load %arg12[%c0_34, %c0_35] : memref<1x128xf32, #tpu.memory_space<vmem>>, vector<1x128xf32>
    %49 = vector.broadcast %48 : vector<1x128xf32> to vector<128x128xf32>
    %50 = arith.addf %47, %49 : vector<128x128xf32>
    %cst_36 = arith.constant 0.000000e+00 : f32
    %51 = vector.broadcast %cst_36 : f32 to vector<128x128xf32>
    %52 = arith.maximumf %50, %51 : vector<128x128xf32>
    %53 = arith.truncf %52 : vector<128x128xf32> to vector<128x128xbf16>
    %c0_37 = arith.constant 0 : index
    %c0_38 = arith.constant 0 : index
    %54 = vector.load %arg13[%c0_37, %c0_38] : memref<128x128xbf16, #tpu.memory_space<vmem>>, vector<128x128xbf16>
    %cst_39 = arith.constant dense<0.000000e+00> : vector<128x128xf32>
    %55 = tpu.matmul %53, %54, %cst_39 {dimension_numbers = #tpu.dot_dimension_numbers<[1], [0], [0], [1], [0, 0, 1, 1], [], []>} : vector<128x128xbf16>, vector<128x128xbf16>, vector<128x128xf32> -> vector<128x128xf32>
    %c0_40 = arith.constant 0 : index
    %c0_41 = arith.constant 0 : index
    %56 = vector.load %arg14[%c0_40, %c0_41] : memref<1x128xf32, #tpu.memory_space<vmem>>, vector<1x128xf32>
    %57 = vector.broadcast %56 : vector<1x128xf32> to vector<128x128xf32>
    %58 = arith.addf %55, %57 : vector<128x128xf32>
    %cst_42 = arith.constant 0.000000e+00 : f32
    %59 = vector.broadcast %cst_42 : f32 to vector<128x128xf32>
    %60 = arith.maximumf %58, %59 : vector<128x128xf32>
    %cst_43 = arith.constant dense<0.000000e+00> : vector<1x128xf32>
    %61 = tpu.matmul %2, %60, %cst_43 {dimension_numbers = #tpu.dot_dimension_numbers<[1], [0], [0], [1], [0, 0, 1, 1], [], []>} : vector<1x128xf32>, vector<128x128xf32>, vector<1x128xf32> -> vector<1x128xf32>
    %62 = arith.mulf %60, %60 : vector<128x128xf32>
    %cst_44 = arith.constant dense<0.000000e+00> : vector<1x128xf32>
    %63 = tpu.matmul %2, %62, %cst_44 {dimension_numbers = #tpu.dot_dimension_numbers<[1], [0], [0], [1], [0, 0, 1, 1], [], []>} : vector<1x128xf32>, vector<128x128xf32>, vector<1x128xf32> -> vector<1x128xf32>
    %64 = arith.mulf %61, %61 : vector<1x128xf32>
    %65 = arith.subf %63, %64 : vector<1x128xf32>
    %cst_45 = arith.constant 0.000000e+00 : f32
    %66 = vector.broadcast %cst_45 : f32 to vector<1x128xf32>
    %67 = arith.maximumf %65, %66 : vector<1x128xf32>
    %68 = vector.broadcast %61 : vector<1x128xf32> to vector<128x128xf32>
    %69 = arith.subf %60, %68 : vector<128x128xf32>
    %cst_46 = arith.constant 9.99999974E-6 : f32
    %70 = vector.broadcast %cst_46 : f32 to vector<1x128xf32>
    %71 = arith.addf %67, %70 : vector<1x128xf32>
    %72 = math.rsqrt %71 : vector<1x128xf32>
    %73 = vector.broadcast %72 : vector<1x128xf32> to vector<128x128xf32>
    %74 = arith.mulf %69, %73 : vector<128x128xf32>
    %c0_47 = arith.constant 0 : index
    %c0_48 = arith.constant 0 : index
    %75 = vector.load %arg15[%c0_47, %c0_48] : memref<1x128xf32, #tpu.memory_space<vmem>>, vector<1x128xf32>
    %76 = vector.broadcast %75 : vector<1x128xf32> to vector<128x128xf32>
    %77 = arith.mulf %74, %76 : vector<128x128xf32>
    %c0_49 = arith.constant 0 : index
    %c0_50 = arith.constant 0 : index
    %78 = vector.load %arg16[%c0_49, %c0_50] : memref<1x128xf32, #tpu.memory_space<vmem>>, vector<1x128xf32>
    %79 = vector.broadcast %78 : vector<1x128xf32> to vector<128x128xf32>
    %80 = arith.addf %77, %79 : vector<128x128xf32>
    %cst_51 = arith.constant dense<0.000000e+00> : vector<4x128xf32>
    %81 = tpu.matmul %3, %80, %cst_51 {dimension_numbers = #tpu.dot_dimension_numbers<[1], [0], [0], [1], [0, 0, 1, 1], [], []>} : vector<4x128xf32>, vector<128x128xf32>, vector<4x128xf32> -> vector<4x128xf32>
    %c0_52 = arith.constant 0 : index
    %c128 = arith.constant 128 : index
    %82 = vector.load %arg23[%c0_52, %c128] : memref<4x384xf32, #tpu.memory_space<vmem>>, vector<4x128xf32>
    tpu.vector_store %arg23[%c0_52, %c128], %81 {strides = array<i32>} : memref<4x384xf32, #tpu.memory_space<vmem>>, vector<4x128xf32>,
    %83 = arith.truncf %80 : vector<128x128xf32> to vector<128x128xbf16>
    %cst_53 = arith.constant dense<0.000000e+00> : vector<128x128xf32>
    %84 = tpu.matmul %0, %83, %cst_53 {dimension_numbers = #tpu.dot_dimension_numbers<[1], [0], [0], [1], [0, 0, 1, 1], [], []>} : vector<128x128xbf16>, vector<128x128xbf16>, vector<128x128xf32> -> vector<128x128xf32>
    %85 = arith.truncf %84 : vector<128x128xf32> to vector<128x128xbf16>
    %c0_54 = arith.constant 0 : index
    %c0_55 = arith.constant 0 : index
    %86 = vector.load %arg17[%c0_54, %c0_55] : memref<128x128xbf16, #tpu.memory_space<vmem>>, vector<128x128xbf16>
    %cst_56 = arith.constant dense<0.000000e+00> : vector<128x128xf32>
    %87 = tpu.matmul %85, %86, %cst_56 {dimension_numbers = #tpu.dot_dimension_numbers<[1], [0], [0], [1], [0, 0, 1, 1], [], []>} : vector<128x128xbf16>, vector<128x128xbf16>, vector<128x128xf32> -> vector<128x128xf32>
    %c0_57 = arith.constant 0 : index
    %c0_58 = arith.constant 0 : index
    %88 = vector.load %arg18[%c0_57, %c0_58] : memref<1x128xf32, #tpu.memory_space<vmem>>, vector<1x128xf32>
    %89 = vector.broadcast %88 : vector<1x128xf32> to vector<128x128xf32>
    %90 = arith.addf %87, %89 : vector<128x128xf32>
    %cst_59 = arith.constant 0.000000e+00 : f32
    %91 = vector.broadcast %cst_59 : f32 to vector<128x128xf32>
    %92 = arith.maximumf %90, %91 : vector<128x128xf32>
    %93 = arith.truncf %92 : vector<128x128xf32> to vector<128x128xbf16>
    %c0_60 = arith.constant 0 : index
    %c0_61 = arith.constant 0 : index
    %94 = vector.load %arg19[%c0_60, %c0_61] : memref<128x128xbf16, #tpu.memory_space<vmem>>, vector<128x128xbf16>
    %cst_62 = arith.constant dense<0.000000e+00> : vector<128x128xf32>
    %95 = tpu.matmul %93, %94, %cst_62 {dimension_numbers = #tpu.dot_dimension_numbers<[1], [0], [0], [1], [0, 0, 1, 1], [], []>} : vector<128x128xbf16>, vector<128x128xbf16>, vector<128x128xf32> -> vector<128x128xf32>
    %c0_63 = arith.constant 0 : index
    %c0_64 = arith.constant 0 : index
    %96 = vector.load %arg20[%c0_63, %c0_64] : memref<1x128xf32, #tpu.memory_space<vmem>>, vector<1x128xf32>
    %97 = vector.broadcast %96 : vector<1x128xf32> to vector<128x128xf32>
    %98 = arith.addf %95, %97 : vector<128x128xf32>
    %cst_65 = arith.constant dense<0.000000e+00> : vector<4x128xf32>
    %99 = tpu.matmul %3, %98, %cst_65 {dimension_numbers = #tpu.dot_dimension_numbers<[1], [0], [0], [1], [0, 0, 1, 1], [], []>} : vector<4x128xf32>, vector<128x128xf32>, vector<4x128xf32> -> vector<4x128xf32>
    %c0_66 = arith.constant 0 : index
    %c256 = arith.constant 256 : index
    %100 = vector.load %arg23[%c0_66, %c256] : memref<4x384xf32, #tpu.memory_space<vmem>>, vector<4x128xf32>
    tpu.vector_store %arg23[%c0_66, %c256], %99 {strides = array<i32>} : memref<4x384xf32, #tpu.memory_space<vmem>>, vector<4x128xf32>,
    return
  }
  func.func @transform_0(%arg0: i32) -> (i32, i32) {
    %c0_i32 = arith.constant 0 : i32
    %c0_i32_0 = arith.constant 0 : i32
    %c0_i32_1 = arith.constant 0 : i32
    return %c0_i32, %c0_i32_0 : i32, i32
  }
  func.func @transform_1(%arg0: i32) -> (i32, i32) {
    %c0_i32 = arith.constant 0 : i32
    %c0_i32_0 = arith.constant 0 : i32
    %c0_i32_1 = arith.constant 0 : i32
    return %c0_i32, %c0_i32_0 : i32, i32
  }
  func.func @transform_2(%arg0: i32) -> (i32, i32) {
    %c0_i32 = arith.constant 0 : i32
    %c0_i32_0 = arith.constant 0 : i32
    %c0_i32_1 = arith.constant 0 : i32
    return %c0_i32, %c0_i32_0 : i32, i32
  }
  func.func @transform_3(%arg0: i32) -> (i32, i32) {
    %c0_i32 = arith.constant 0 : i32
    %c0_i32_0 = arith.constant 0 : i32
    %c0_i32_1 = arith.constant 0 : i32
    return %c0_i32, %c0_i32_0 : i32, i32
  }
  func.func @transform_4(%arg0: i32) -> (i32, i32) {
    %c0_i32 = arith.constant 0 : i32
    %c0_i32_0 = arith.constant 0 : i32
    %c0_i32_1 = arith.constant 0 : i32
    return %c0_i32, %c0_i32_0 : i32, i32
  }
  func.func @transform_5(%arg0: i32) -> (i32, i32) {
    %c0_i32 = arith.constant 0 : i32
    %c0_i32_0 = arith.constant 0 : i32
    %c0_i32_1 = arith.constant 0 : i32
    return %c0_i32, %c0_i32_0 : i32, i32
  }
  func.func @transform_6(%arg0: i32) -> (i32, i32) {
    %c0_i32 = arith.constant 0 : i32
    %c0_i32_0 = arith.constant 0 : i32
    %c0_i32_1 = arith.constant 0 : i32
    return %c0_i32, %c0_i32_0 : i32, i32
  }
  func.func @transform_7(%arg0: i32) -> (i32, i32) {
    %c0_i32 = arith.constant 0 : i32
    %c0_i32_0 = arith.constant 0 : i32
    %c0_i32_1 = arith.constant 0 : i32
    return %c0_i32, %c0_i32_0 : i32, i32
  }
  func.func @transform_8(%arg0: i32) -> (i32, i32) {
    %c0_i32 = arith.constant 0 : i32
    %c0_i32_0 = arith.constant 0 : i32
    %c0_i32_1 = arith.constant 0 : i32
    return %c0_i32, %c0_i32_0 : i32, i32
  }
  func.func @transform_9(%arg0: i32) -> (i32, i32) {
    %c0_i32 = arith.constant 0 : i32
    %c0_i32_0 = arith.constant 0 : i32
    %c0_i32_1 = arith.constant 0 : i32
    return %c0_i32, %c0_i32_0 : i32, i32
  }
  func.func @transform_10(%arg0: i32) -> (i32, i32) {
    %c0_i32 = arith.constant 0 : i32
    %c0_i32_0 = arith.constant 0 : i32
    %c0_i32_1 = arith.constant 0 : i32
    return %c0_i32, %c0_i32_0 : i32, i32
  }
  func.func @transform_11(%arg0: i32) -> (i32, i32) {
    %c0_i32 = arith.constant 0 : i32
    %c0_i32_0 = arith.constant 0 : i32
    %c0_i32_1 = arith.constant 0 : i32
    return %c0_i32, %c0_i32_0 : i32, i32
  }
  func.func @transform_12(%arg0: i32) -> (i32, i32) {
    %c0_i32 = arith.constant 0 : i32
    %c0_i32_0 = arith.constant 0 : i32
    %c0_i32_1 = arith.constant 0 : i32
    return %c0_i32, %c0_i32_0 : i32, i32
  }
  func.func @transform_13(%arg0: i32) -> (i32, i32) {
    %c0_i32 = arith.constant 0 : i32
    %c0_i32_0 = arith.constant 0 : i32
    %c0_i32_1 = arith.constant 0 : i32
    return %c0_i32, %c0_i32_0 : i32, i32
  }
  func.func @transform_14(%arg0: i32) -> (i32, i32) {
    %c0_i32 = arith.constant 0 : i32
    %c0_i32_0 = arith.constant 0 : i32
    %c0_i32_1 = arith.constant 0 : i32
    return %c0_i32, %c0_i32_0 : i32, i32
  }
  func.func @transform_15(%arg0: i32) -> (i32, i32) {
    %c0_i32 = arith.constant 0 : i32
    %c0_i32_0 = arith.constant 0 : i32
    %c0_i32_1 = arith.constant 0 : i32
    return %c0_i32, %c0_i32_0 : i32, i32
  }
  func.func @transform_16(%arg0: i32) -> (i32, i32) {
    %c0_i32 = arith.constant 0 : i32
    %c0_i32_0 = arith.constant 0 : i32
    %c0_i32_1 = arith.constant 0 : i32
    return %c0_i32, %c0_i32_0 : i32, i32
  }
  func.func @transform_17(%arg0: i32) -> (i32, i32) {
    %c0_i32 = arith.constant 0 : i32
    %c0_i32_0 = arith.constant 0 : i32
    %c0_i32_1 = arith.constant 0 : i32
    return %c0_i32, %c0_i32_0 : i32, i32
  }
  func.func @transform_18(%arg0: i32) -> (i32, i32) {
    %c0_i32 = arith.constant 0 : i32
    %c0_i32_0 = arith.constant 0 : i32
    %c0_i32_1 = arith.constant 0 : i32
    return %c0_i32, %c0_i32_0 : i32, i32
  }
  func.func @transform_19(%arg0: i32) -> (i32, i32) {
    %c0_i32 = arith.constant 0 : i32
    %c0_i32_0 = arith.constant 0 : i32
    %c0_i32_1 = arith.constant 0 : i32
    return %c0_i32, %c0_i32_0 : i32, i32
  }
  func.func @transform_20(%arg0: i32) -> (i32, i32) {
    %c0_i32 = arith.constant 0 : i32
    %c0_i32_0 = arith.constant 0 : i32
    %c0_i32_1 = arith.constant 0 : i32
    return %c0_i32, %c0_i32_0 : i32, i32
  }
  func.func @transform_21(%arg0: i32) -> (i32, i32) {
    %c0_i32 = arith.constant 0 : i32
    %c0_i32_0 = arith.constant 0 : i32
    %c0_i32_1 = arith.constant 0 : i32
    return %c0_i32, %c0_i32_0 : i32, i32
  }
  func.func @transform_22(%arg0: i32) -> (i32, i32) {
    %c0_i32 = arith.constant 0 : i32
    %c0_i32_0 = arith.constant 0 : i32
    %c0_i32_1 = arith.constant 0 : i32
    return %c0_i32, %c0_i32_0 : i32, i32
  }
}

</mosaic_0001>

<llo_original>
// kernel: tpu_custom_call.1
$region0: #{tpu_custom_call.1}
  #allocation0 [shape = 'u32[]', space=smem, size = 0x4, offset = 0x4, fixed_abs, tag = 'smem constant byte address 0x4 - core index']
  #allocation1 [shape = 'u32[144,128]{1,0:T(1,128)}', space=vmem, size = 0x12000, scoped, tag = 'internal scratch']
  %s0 = inlined_call_operand.hbm [shape: bf16[128,128], index: 0, kind: input, shape index: {}]
  %s1 = inlined_call_operand.hbm [shape: bf16[128,128], index: 1, kind: input, shape index: {}]
  %s2 = inlined_call_operand.hbm [shape: f32[1,128], index: 2, kind: input, shape index: {}]
  %s3 = inlined_call_operand.vmem [shape: f32[4,128], index: 3, kind: input, shape index: {}]
  %s4 = inlined_call_operand.hbm [shape: bf16[128,128], index: 4, kind: input, shape index: {}]
  %s5 = inlined_call_operand.hbm [shape: f32[1,128], index: 5, kind: input, shape index: {}]
  %s6 = inlined_call_operand.hbm [shape: bf16[128,128], index: 6, kind: input, shape index: {}]
  %s7 = inlined_call_operand.hbm [shape: f32[1,128], index: 7, kind: input, shape index: {}]
  %s8 = inlined_call_operand.hbm [shape: f32[1,128], index: 8, kind: input, shape index: {}]
  %s9 = inlined_call_operand.hbm [shape: f32[1,128], index: 9, kind: input, shape index: {}]
  %s10 = inlined_call_operand.hbm [shape: bf16[128,128], index: 10, kind: input, shape index: {}]
  %s11 = inlined_call_operand.hbm [shape: f32[1,128], index: 11, kind: input, shape index: {}]
  %s12 = inlined_call_operand.hbm [shape: bf16[128,128], index: 12, kind: input, shape index: {}]
  %s13 = inlined_call_operand.hbm [shape: f32[1,128], index: 13, kind: input, shape index: {}]
  %s14 = inlined_call_operand.hbm [shape: f32[1,128], index: 14, kind: input, shape index: {}]
  %s15 = inlined_call_operand.hbm [shape: f32[1,128], index: 15, kind: input, shape index: {}]
  %s16 = inlined_call_operand.hbm [shape: bf16[128,128], index: 16, kind: input, shape index: {}]
  %s17 = inlined_call_operand.hbm [shape: f32[1,128], index: 17, kind: input, shape index: {}]
  %s18 = inlined_call_operand.vmem [shape: bf16[128,128], index: 18, kind: input, shape index: {}]
  %s19 = inlined_call_operand.vmem [shape: f32[1,128], index: 19, kind: input, shape index: {}]
  %s20 = inlined_call_operand.vmem [shape: f32[1,128], index: 20, kind: input, shape index: {}]
  %s21 = inlined_call_operand.vmem [shape: f32[1,128], index: 21, kind: input, shape index: {}]
  %s22 = inlined_call_operand.hbm [shape: f32[4,384], index: 22, kind: output, shape index: {}]
  %s23 = sld [smem:[#allocation0]]
  $region166: #{tpu_custom_call.1} parent=0
    _
  %s25 = ssub.s32 1, %s23
  %s26 = scalar_select 0, %s25, %s23
  $region1: #{tpu_custom_call.1} parent=0
    #allocation2 [shape = 'u8[32768]{0}', space=vmem, size = 0x8000, scoped, tag = 'input window, operand 0, single buffered']
    #allocation3 [shape = 's32[1]{0}', space=sflag, size = 0x4, scoped, tag = 'scoped memory for tpu_custom_call.1']
    #allocation4 [shape = 's32[1]{0}', space=sflag, size = 0x4, scoped, tag = 'scoped memory for tpu_custom_call.1']
    #allocation5 [shape = 'u8[32768]{0}', space=vmem, size = 0x8000, scoped, tag = 'input window, operand 1, single buffered']
    #allocation6 [shape = 's32[1]{0}', space=sflag, size = 0x4, scoped, tag = 'scoped memory for tpu_custom_call.1']
    #allocation7 [shape = 'u8[512]{0}', space=vmem, size = 0x400, scoped, tag = 'input window, operand 2, single buffered']
    #allocation8 [shape = 'u8[32768]{0}', space=vmem, size = 0x8000, scoped, tag = 'input window, operand 4, single buffered']
    #allocation9 [shape = 's32[1]{0}', space=sflag, size = 0x4, scoped, tag = 'scoped memory for tpu_custom_call.1']
    #allocation10 [shape = 'u8[512]{0}', space=vmem, size = 0x400, scoped, tag = 'input window, operand 5, single buffered']
    #allocation11 [shape = 'u8[32768]{0}', space=vmem, size = 0x8000, scoped, tag = 'input window, operand 6, single buffered']
    #allocation12 [shape = 's32[1]{0}', space=sflag, size = 0x4, scoped, tag = 'scoped memory for tpu_custom_call.1']
    #allocation13 [shape = 'u8[512]{0}', space=vmem, size = 0x400, scoped, tag = 'input window, operand 7, single buffered']
    #allocation14 [shape = 'u8[512]{0}', space=vmem, size = 0x400, scoped, tag = 'input window, operand 8, single buffered']
    #allocation15 [shape = 's32[1]{0}', space=sflag, size = 0x4, scoped, tag = 'scoped memory for tpu_custom_call.1']
    #allocation16 [shape = 'u8[512]{0}', space=vmem, size = 0x400, scoped, tag = 'input window, operand 9, single buffered']
    #allocation17 [shape = 'u8[32768]{0}', space=vmem, size = 0x8000, scoped, tag = 'input window, operand 10, single buffered']
    #allocation18 [shape = 's32[1]{0}', space=sflag, size = 0x4, scoped, tag = 'scoped memory for tpu_custom_call.1']
    #allocation19 [shape = 'u8[512]{0}', space=vmem, size = 0x400, scoped, tag = 'input window, operand 11, single buffered']
    #allocation20 [shape = 'u8[32768]{0}', space=vmem, size = 0x8000, scoped, tag = 'input window, operand 12, single buffered']
    #allocation21 [shape = 's32[1]{0}', space=sflag, size = 0x4, scoped, tag = 'scoped memory for tpu_custom_call.1']
    #allocation22 [shape = 'u8[512]{0}', space=vmem, size = 0x400, scoped, tag = 'input window, operand 13, single buffered']
    #allocation23 [shape = 'u8[512]{0}', space=vmem, size = 0x400, scoped, tag = 'input window, operand 14, single buffered']
    #allocation24 [shape = 's32[1]{0}', space=sflag, size = 0x4, scoped, tag = 'scoped memory for tpu_custom_call.1']
    #allocation25 [shape = 'u8[512]{0}', space=vmem, size = 0x400, scoped, tag = 'input window, operand 15, single buffered']
    #allocation26 [shape = 'u8[32768]{0}', space=vmem, size = 0x8000, scoped, tag = 'input window, operand 16, single buffered']
    #allocation27 [shape = 's32[1]{0}', space=sflag, size = 0x4, scoped, tag = 'scoped memory for tpu_custom_call.1']
    #allocation28 [shape = 'u8[512]{0}', space=vmem, size = 0x400, scoped, tag = 'input window, operand 17, single buffered']
    #allocation29 [shape = 'u8[6144]{0}', space=vmem, size = 0x1800, scoped, tag = 'output window, operand 0, single buffered']
    %27 = vsyncpa [#allocation3], 0
    %28 = vsyncpa [#allocation6], 0
    %29 = vsyncpa [#allocation9], 0
    %30 = vsyncpa [#allocation12], 0
    %31 = vsyncpa [#allocation15], 0
    %32 = vsyncpa [#allocation18], 0
    %33 = vsyncpa [#allocation21], 0
    %34 = vsyncpa [#allocation24], 0
    %35 = vsyncpa [#allocation27], 0
    %36 = vsyncpa [#allocation4], 0
    // Predicated region
    $region2: #{tpu_custom_call.1} parent=1 // pred_check
      _
    $region3: #{tpu_custom_call.1} parent=1 // pred_check_branch
      %38 = sbr.rel (0) target = $region5
    $region4: #{tpu_custom_call.1} parent=1 // pred_region
      %s40 = ssub.s32 1024, 1024
      %41 = vsyncadd [#allocation3], %s40
      %s42 = sshll.u32 [#allocation2], 4
      %s43 = int_to_ptr.vmem [resolvable:$true] %s42
      %48 = dma.hbm_to_vmem [thread:$0]  %s0, 1024, %s43, [#allocation3], 64, 64, 4
    $region5: #{tpu_custom_call.1} parent=1 // pred_fallthru
      _
    // Predicated region
    $region6: #{tpu_custom_call.1} parent=1 // pred_check
      _
    $region7: #{tpu_custom_call.1} parent=1 // pred_check_branch
      %50 = sbr.rel (0) target = $region9
    $region8: #{tpu_custom_call.1} parent=1 // pred_region
      %s52 = ssub.s32 1024, 1024
      %53 = vsyncadd [#allocation6], %s52
      %s54 = sshll.u32 [#allocation5], 4
      %s55 = int_to_ptr.vmem [resolvable:$true] %s54
      %60 = dma.hbm_to_vmem [thread:$0]  %s1, 1024, %s55, [#allocation6], 64, 64, 4
    $region9: #{tpu_custom_call.1} parent=1 // pred_fallthru
      _
    // Predicated region
    $region10: #{tpu_custom_call.1} parent=1 // pred_check
      _
    $region11: #{tpu_custom_call.1} parent=1 // pred_check_branch
      %62 = sbr.rel (0) target = $region13
    $region12: #{tpu_custom_call.1} parent=1 // pred_region
      %s64 = ssub.s32 16, 16
      %65 = vsyncadd [#allocation6], %s64
      %s67 = sshll.u32 [#allocation7], 4
      %s68 = int_to_ptr.vmem [resolvable:$true] %s67
      %70 = dma.hbm_to_vmem [thread:$0]  %s2, 16, %s68, [#allocation6]
    $region13: #{tpu_custom_call.1} parent=1 // pred_fallthru
      _
    // Predicated region
    $region14: #{tpu_custom_call.1} parent=1 // pred_check
      _
    $region15: #{tpu_custom_call.1} parent=1 // pred_check_branch
      %72 = sbr.rel (0) target = $region17
    $region16: #{tpu_custom_call.1} parent=1 // pred_region
      _
    $region17: #{tpu_custom_call.1} parent=1 // pred_fallthru
      _
    // Predicated region
    $region18: #{tpu_custom_call.1} parent=1 // pred_check
      _
    $region19: #{tpu_custom_call.1} parent=1 // pred_check_branch
      %74 = sbr.rel (0) target = $region21
    $region20: #{tpu_custom_call.1} parent=1 // pred_region
      %s76 = ssub.s32 1024, 1024
      %77 = vsyncadd [#allocation9], %s76
      %s78 = sshll.u32 [#allocation8], 4
      %s79 = int_to_ptr.vmem [resolvable:$true] %s78
      %84 = dma.hbm_to_vmem [thread:$0]  %s4, 1024, %s79, [#allocation9], 64, 64, 4
    $region21: #{tpu_custom_call.1} parent=1 // pred_fallthru
      _
    // Predicated region
    $region22: #{tpu_custom_call.1} parent=1 // pred_check
      _
    $region23: #{tpu_custom_call.1} parent=1 // pred_check_branch
      %86 = sbr.rel (0) target = $region25
    $region24: #{tpu_custom_call.1} parent=1 // pred_region
      %s88 = ssub.s32 16, 16
      %89 = vsyncadd [#allocation9], %s88
      %s91 = sshll.u32 [#allocation10], 4
      %s92 = int_to_ptr.vmem [resolvable:$true] %s91
      %94 = dma.hbm_to_vmem [thread:$0]  %s5, 16, %s92, [#allocation9]
    $region25: #{tpu_custom_call.1} parent=1 // pred_fallthru
      _
    // Predicated region
    $region26: #{tpu_custom_call.1} parent=1 // pred_check
      _
    $region27: #{tpu_custom_call.1} parent=1 // pred_check_branch
      %96 = sbr.rel (0) target = $region29
    $region28: #{tpu_custom_call.1} parent=1 // pred_region
      %s98 = ssub.s32 1024, 1024
      %99 = vsyncadd [#allocation12], %s98
      %s100 = sshll.u32 [#allocation11], 4
      %s101 = int_to_ptr.vmem [resolvable:$true] %s100
      %106 = dma.hbm_to_vmem [thread:$0]  %s6, 1024, %s101, [#allocation12], 64, 64, 4
    $region29: #{tpu_custom_call.1} parent=1 // pred_fallthru
      _
    // Predicated region
    $region30: #{tpu_custom_call.1} parent=1 // pred_check
      _
    $region31: #{tpu_custom_call.1} parent=1 // pred_check_branch
      %108 = sbr.rel (0) target = $region33
    $region32: #{tpu_custom_call.1} parent=1 // pred_region
      %s110 = ssub.s32 16, 16
      %111 = vsyncadd [#allocation12], %s110
      %s113 = sshll.u32 [#allocation13], 4
      %s114 = int_to_ptr.vmem [resolvable:$true] %s113
      %116 = dma.hbm_to_vmem [thread:$0]  %s7, 16, %s114, [#allocation12]
    $region33: #{tpu_custom_call.1} parent=1 // pred_fallthru
      _
    // Predicated region
    $region34: #{tpu_custom_call.1} parent=1 // pred_check
      _
    $region35: #{tpu_custom_call.1} parent=1 // pred_check_branch
      %118 = sbr.rel (0) target = $region37
    $region36: #{tpu_custom_call.1} parent=1 // pred_region
      %s120 = ssub.s32 16, 16
      %121 = vsyncadd [#allocation15], %s120
      %s123 = sshll.u32 [#allocation14], 4
      %s124 = int_to_ptr.vmem [resolvable:$true] %s123
      %126 = dma.hbm_to_vmem [thread:$0]  %s8, 16, %s124, [#allocation15]
    $region37: #{tpu_custom_call.1} parent=1 // pred_fallthru
      _
    // Predicated region
    $region38: #{tpu_custom_call.1} parent=1 // pred_check
      _
    $region39: #{tpu_custom_call.1} parent=1 // pred_check_branch
      %128 = sbr.rel (0) target = $region41
    $region40: #{tpu_custom_call.1} parent=1 // pred_region
      %s130 = ssub.s32 16, 16
      %131 = vsyncadd [#allocation15], %s130
      %s133 = sshll.u32 [#allocation16], 4
      %s134 = int_to_ptr.vmem [resolvable:$true] %s133
      %136 = dma.hbm_to_vmem [thread:$0]  %s9, 16, %s134, [#allocation15]
    $region41: #{tpu_custom_call.1} parent=1 // pred_fallthru
      _
    // Predicated region
    $region42: #{tpu_custom_call.1} parent=1 // pred_check
      _
    $region43: #{tpu_custom_call.1} parent=1 // pred_check_branch
      %138 = sbr.rel (0) target = $region45
    $region44: #{tpu_custom_call.1} parent=1 // pred_region
      %s140 = ssub.s32 1024, 1024
      %141 = vsyncadd [#allocation18], %s140
      %s142 = sshll.u32 [#allocation17], 4
      %s143 = int_to_ptr.vmem [resolvable:$true] %s142
      %148 = dma.hbm_to_vmem [thread:$0]  %s10, 1024, %s143, [#allocation18], 64, 64, 4
    $region45: #{tpu_custom_call.1} parent=1 // pred_fallthru
      _
    // Predicated region
    $region46: #{tpu_custom_call.1} parent=1 // pred_check
      _
    $region47: #{tpu_custom_call.1} parent=1 // pred_check_branch
      %150 = sbr.rel (0) target = $region49
    $region48: #{tpu_custom_call.1} parent=1 // pred_region
      %s152 = ssub.s32 16, 16
      %153 = vsyncadd [#allocation18], %s152
      %s155 = sshll.u32 [#allocation19], 4
      %s156 = int_to_ptr.vmem [resolvable:$true] %s155
      %158 = dma.hbm_to_vmem [thread:$0]  %s11, 16, %s156, [#allocation18]
    $region49: #{tpu_custom_call.1} parent=1 // pred_fallthru
      _
    // Predicated region
    $region50: #{tpu_custom_call.1} parent=1 // pred_check
      _
    $region51: #{tpu_custom_call.1} parent=1 // pred_check_branch
      %160 = sbr.rel (0) target = $region53
    $region52: #{tpu_custom_call.1} parent=1 // pred_region
      %s162 = ssub.s32 1024, 1024
      %163 = vsyncadd [#allocation21], %s162
      %s164 = sshll.u32 [#allocation20], 4
      %s165 = int_to_ptr.vmem [resolvable:$true] %s164
      %170 = dma.hbm_to_vmem [thread:$0]  %s12, 1024, %s165, [#allocation21], 64, 64, 4
    $region53: #{tpu_custom_call.1} parent=1 // pred_fallthru
      _
    // Predicated region
    $region54: #{tpu_custom_call.1} parent=1 // pred_check
      _
    $region55: #{tpu_custom_call.1} parent=1 // pred_check_branch
      %172 = sbr.rel (0) target = $region57
    $region56: #{tpu_custom_call.1} parent=1 // pred_region
      %s174 = ssub.s32 16, 16
      %175 = vsyncadd [#allocation21], %s174
      %s177 = sshll.u32 [#allocation22], 4
      %s178 = int_to_ptr.vmem [resolvable:$true] %s177
      %180 = dma.hbm_to_vmem [thread:$0]  %s13, 16, %s178, [#allocation21]
    $region57: #{tpu_custom_call.1} parent=1 // pred_fallthru
      _
    // Predicated region
    $region58: #{tpu_custom_call.1} parent=1 // pred_check
      _
    $region59: #{tpu_custom_call.1} parent=1 // pred_check_branch
      %182 = sbr.rel (0) target = $region61
    $region60: #{tpu_custom_call.1} parent=1 // pred_region
      %s184 = ssub.s32 16, 16
      %185 = vsyncadd [#allocation24], %s184
      %s187 = sshll.u32 [#allocation23], 4
      %s188 = int_to_ptr.vmem [resolvable:$true] %s187
      %190 = dma.hbm_to_vmem [thread:$0]  %s14, 16, %s188, [#allocation24]
    $region61: #{tpu_custom_call.1} parent=1 // pred_fallthru
      _
    // Predicated region
    $region62: #{tpu_custom_call.1} parent=1 // pred_check
      _
    $region63: #{tpu_custom_call.1} parent=1 // pred_check_branch
      %192 = sbr.rel (0) target = $region65
    $region64: #{tpu_custom_call.1} parent=1 // pred_region
      %s194 = ssub.s32 16, 16
      %195 = vsyncadd [#allocation24], %s194
      %s197 = sshll.u32 [#allocation25], 4
      %s198 = int_to_ptr.vmem [resolvable:$true] %s197
      %200 = dma.hbm_to_vmem [thread:$0]  %s15, 16, %s198, [#allocation24]
    $region65: #{tpu_custom_call.1} parent=1 // pred_fallthru
      _
    // Predicated region
    $region66: #{tpu_custom_call.1} parent=1 // pred_check
      _
    $region67: #{tpu_custom_call.1} parent=1 // pred_check_branch
      %202 = sbr.rel (0) target = $region69
    $region68: #{tpu_custom_call.1} parent=1 // pred_region
      %s204 = ssub.s32 1024, 1024
      %205 = vsyncadd [#allocation27], %s204
      %s206 = sshll.u32 [#allocation26], 4
      %s207 = int_to_ptr.vmem [resolvable:$true] %s206
      %212 = dma.hbm_to_vmem [thread:$0]  %s16, 1024, %s207, [#allocation27], 64, 64, 4
    $region69: #{tpu_custom_call.1} parent=1 // pred_fallthru
      _
    // Predicated region
    $region70: #{tpu_custom_call.1} parent=1 // pred_check
      _
    $region71: #{tpu_custom_call.1} parent=1 // pred_check_branch
      %214 = sbr.rel (0) target = $region73
    $region72: #{tpu_custom_call.1} parent=1 // pred_region
      %s216 = ssub.s32 16, 16
      %217 = vsyncadd [#allocation27], %s216
      %s219 = sshll.u32 [#allocation28], 4
      %s220 = int_to_ptr.vmem [resolvable:$true] %s219
      %222 = dma.hbm_to_vmem [thread:$0]  %s17, 16, %s220, [#allocation27]
    $region73: #{tpu_custom_call.1} parent=1 // pred_fallthru
      _
    // Predicated region
    $region74: #{tpu_custom_call.1} parent=1 // pred_check
      _
    $region75: #{tpu_custom_call.1} parent=1 // pred_check_branch
      %224 = sbr.rel (0) target = $region77
    $region76: #{tpu_custom_call.1} parent=1 // pred_region
      _
    $region77: #{tpu_custom_call.1} parent=1 // pred_fallthru
      _
    // Predicated region
    $region78: #{tpu_custom_call.1} parent=1 // pred_check
      _
    $region79: #{tpu_custom_call.1} parent=1 // pred_check_branch
      %226 = sbr.rel (0) target = $region81
    $region80: #{tpu_custom_call.1} parent=1 // pred_region
      _
    $region81: #{tpu_custom_call.1} parent=1 // pred_fallthru
      _
    // Predicated region
    $region82: #{tpu_custom_call.1} parent=1 // pred_check
      _
    $region83: #{tpu_custom_call.1} parent=1 // pred_check_branch
      %228 = sbr.rel (0) target = $region85
    $region84: #{tpu_custom_call.1} parent=1 // pred_region
      _
    $region85: #{tpu_custom_call.1} parent=1 // pred_fallthru
      _
    // Predicated region
    $region86: #{tpu_custom_call.1} parent=1 // pred_check
      _
    $region87: #{tpu_custom_call.1} parent=1 // pred_check_branch
      %230 = sbr.rel (0) target = $region89
    $region88: #{tpu_custom_call.1} parent=1 // pred_region
      _
    $region89: #{tpu_custom_call.1} parent=1 // pred_fallthru
      _
    // Predicated region
    $region90: #{tpu_custom_call.1} parent=1 // pred_check
      _
    $region91: #{tpu_custom_call.1} parent=1 // pred_check_branch
      %232 = sbr.rel (0) target = $region93
    $region92: #{tpu_custom_call.1} parent=1 // pred_region
      %233 = dma.done [#allocation3], 1024
    $region93: #{tpu_custom_call.1} parent=1 // pred_fallthru
      _
    // Predicated region
    $region94: #{tpu_custom_call.1} parent=1 // pred_check
      _
    $region95: #{tpu_custom_call.1} parent=1 // pred_check_branch
      %235 = sbr.rel (0) target = $region97
    $region96: #{tpu_custom_call.1} parent=1 // pred_region
      %236 = dma.done [#allocation6], 1024
    $region97: #{tpu_custom_call.1} parent=1 // pred_fallthru
      _
    // Predicated region
    $region98: #{tpu_custom_call.1} parent=1 // pred_check
      _
    $region99: #{tpu_custom_call.1} parent=1 // pred_check_branch
      %238 = sbr.rel (0) target = $region101
    $region100: #{tpu_custom_call.1} parent=1 // pred_region
      %239 = dma.done [#allocation6], 16
    $region101: #{tpu_custom_call.1} parent=1 // pred_fallthru
      _
    // Predicated region
    $region102: #{tpu_custom_call.1} parent=1 // pred_check
      _
    $region103: #{tpu_custom_call.1} parent=1 // pred_check_branch
      %241 = sbr.rel (0) target = $region105
    $region104: #{tpu_custom_call.1} parent=1 // pred_region
      %242 = dma.done [#allocation9], 1024
    $region105: #{tpu_custom_call.1} parent=1 // pred_fallthru
      _
    // Predicated region
    $region106: #{tpu_custom_call.1} parent=1 // pred_check
      _
    $region107: #{tpu_custom_call.1} parent=1 // pred_check_branch
      %244 = sbr.rel (0) target = $region109
    $region108: #{tpu_custom_call.1} parent=1 // pred_region
      %245 = dma.done [#allocation9], 16
    $region109: #{tpu_custom_call.1} parent=1 // pred_fallthru
      _
    // Predicated region
    $region110: #{tpu_custom_call.1} parent=1 // pred_check
      _
    $region111: #{tpu_custom_call.1} parent=1 // pred_check_branch
      %247 = sbr.rel (0) target = $region113
    $region112: #{tpu_custom_call.1} parent=1 // pred_region
      %248 = dma.done [#allocation12], 1024
    $region113: #{tpu_custom_call.1} parent=1 // pred_fallthru
      _
    // Predicated region
    $region114: #{tpu_custom_call.1} parent=1 // pred_check
      _
    $region115: #{tpu_custom_call.1} parent=1 // pred_check_branch
      %250 = sbr.rel (0) target = $region117
    $region116: #{tpu_custom_call.1} parent=1 // pred_region
      %251 = dma.done [#allocation12], 16
    $region117: #{tpu_custom_call.1} parent=1 // pred_fallthru
      _
    // Predicated region
    $region118: #{tpu_custom_call.1} parent=1 // pred_check
      _
    $region119: #{tpu_custom_call.1} parent=1 // pred_check_branch
      %253 = sbr.rel (0) target = $region121
    $region120: #{tpu_custom_call.1} parent=1 // pred_region
      %254 = dma.done [#allocation15], 16
    $region121: #{tpu_custom_call.1} parent=1 // pred_fallthru
      _
    // Predicated region
    $region122: #{tpu_custom_call.1} parent=1 // pred_check
      _
    $region123: #{tpu_custom_call.1} parent=1 // pred_check_branch
      %256 = sbr.rel (0) target = $region125
    $region124: #{tpu_custom_call.1} parent=1 // pred_region
      %257 = dma.done [#allocation15], 16
    $region125: #{tpu_custom_call.1} parent=1 // pred_fallthru
      _
    // Predicated region
    $region126: #{tpu_custom_call.1} parent=1 // pred_check
      _
    $region127: #{tpu_custom_call.1} parent=1 // pred_check_branch
      %259 = sbr.rel (0) target = $region129
    $region128: #{tpu_custom_call.1} parent=1 // pred_region
      %260 = dma.done [#allocation18], 1024
    $region129: #{tpu_custom_call.1} parent=1 // pred_fallthru
      _
    // Predicated region
    $region130: #{tpu_custom_call.1} parent=1 // pred_check
      _
    $region131: #{tpu_custom_call.1} parent=1 // pred_check_branch
      %262 = sbr.rel (0) target = $region133
    $region132: #{tpu_custom_call.1} parent=1 // pred_region
      %263 = dma.done [#allocation18], 16
    $region133: #{tpu_custom_call.1} parent=1 // pred_fallthru
      _
    // Predicated region
    $region134: #{tpu_custom_call.1} parent=1 // pred_check
      _
    $region135: #{tpu_custom_call.1} parent=1 // pred_check_branch
      %265 = sbr.rel (0) target = $region137
    $region136: #{tpu_custom_call.1} parent=1 // pred_region
      %266 = dma.done [#allocation21], 1024
    $region137: #{tpu_custom_call.1} parent=1 // pred_fallthru
      _
    // Predicated region
    $region138: #{tpu_custom_call.1} parent=1 // pred_check
      _
    $region139: #{tpu_custom_call.1} parent=1 // pred_check_branch
      %268 = sbr.rel (0) target = $region141
    $region140: #{tpu_custom_call.1} parent=1 // pred_region
      %269 = dma.done [#allocation21], 16
    $region141: #{tpu_custom_call.1} parent=1 // pred_fallthru
      _
    // Predicated region
    $region142: #{tpu_custom_call.1} parent=1 // pred_check
      _
    $region143: #{tpu_custom_call.1} parent=1 // pred_check_branch
      %271 = sbr.rel (0) target = $region145
    $region144: #{tpu_custom_call.1} parent=1 // pred_region
      %272 = dma.done [#allocation24], 16
    $region145: #{tpu_custom_call.1} parent=1 // pred_fallthru
      _
    // Predicated region
    $region146: #{tpu_custom_call.1} parent=1 // pred_check
      _
    $region147: #{tpu_custom_call.1} parent=1 // pred_check_branch
      %274 = sbr.rel (0) target = $region149
    $region148: #{tpu_custom_call.1} parent=1 // pred_region
      %275 = dma.done [#allocation24], 16
    $region149: #{tpu_custom_call.1} parent=1 // pred_fallthru
      _
    // Predicated region
    $region150: #{tpu_custom_call.1} parent=1 // pred_check
      _
    $region151: #{tpu_custom_call.1} parent=1 // pred_check_branch
      %277 = sbr.rel (0) target = $region153
    $region152: #{tpu_custom_call.1} parent=1 // pred_region
      %278 = dma.done [#allocation27], 1024
    $region153: #{tpu_custom_call.1} parent=1 // pred_fallthru
      _
    // Predicated region
    $region154: #{tpu_custom_call.1} parent=1 // pred_check
      _
    $region155: #{tpu_custom_call.1} parent=1 // pred_check_branch
      %280 = sbr.rel (0) target = $region157
    $region156: #{tpu_custom_call.1} parent=1 // pred_region
      %281 = dma.done [#allocation27], 16
    $region157: #{tpu_custom_call.1} parent=1 // pred_fallthru
      _
    %v283 = vld [vmem:[#allocation2] sm:$0xf]
    %v284 = vld [vmem:[#allocation2 + $0x4] sm:$0xf]
    %v285 = vld [vmem:[#allocation2 + $0x8] sm:$0xf]
    %v286 = vld [vmem:[#allocation2 + $0xc] sm:$0xf]
    %v287 = vld [vmem:[#allocation2 + $0x10] sm:$0xf]
    %v288 = vld [vmem:[#allocation2 + $0x14] sm:$0xf]
    %v289 = vld [vmem:[#allocation2 + $0x18] sm:$0xf]
    %v290 = vld [vmem:[#allocation2 + $0x1c] sm:$0xf]
    %v291 = vld [vmem:[#allocation2 + $0x20] sm:$0xf]
    %v292 = vld [vmem:[#allocation2 + $0x24] sm:$0xf]
    %v293 = vld [vmem:[#allocation2 + $0x28] sm:$0xf]
    %v294 = vld [vmem:[#allocation2 + $0x2c] sm:$0xf]
    %v295 = vld [vmem:[#allocation2 + $0x30] sm:$0xf]
    %v296 = vld [vmem:[#allocation2 + $0x34] sm:$0xf]
    %v297 = vld [vmem:[#allocation2 + $0x38] sm:$0xf]
    %v298 = vld [vmem:[#allocation2 + $0x3c] sm:$0xf]
    %v299 = vld [vmem:[#allocation5] sm:$0xf]
    %v300 = vld [vmem:[#allocation5 + $0x4] sm:$0xf]
    %v301 = vld [vmem:[#allocation5 + $0x8] sm:$0xf]
    %v302 = vld [vmem:[#allocation5 + $0xc] sm:$0xf]
    %v303 = vld [vmem:[#allocation5 + $0x10] sm:$0xf]
    %v304 = vld [vmem:[#allocation5 + $0x14] sm:$0xf]
    %v305 = vld [vmem:[#allocation5 + $0x18] sm:$0xf]
    %v306 = vld [vmem:[#allocation5 + $0x1c] sm:$0xf]
    %v307 = vld [vmem:[#allocation5 + $0x20] sm:$0xf]
    %v308 = vld [vmem:[#allocation5 + $0x24] sm:$0xf]
    %v309 = vld [vmem:[#allocation5 + $0x28] sm:$0xf]
    %v310 = vld [vmem:[#allocation5 + $0x2c] sm:$0xf]
    %v311 = vld [vmem:[#allocation5 + $0x30] sm:$0xf]
    %v312 = vld [vmem:[#allocation5 + $0x34] sm:$0xf]
    %v313 = vld [vmem:[#allocation5 + $0x38] sm:$0xf]
    %v314 = vld [vmem:[#allocation5 + $0x3c] sm:$0xf]
    %v315 = vld [vmem:[#allocation7] sm:$0x1]
    %v316 = vld [vmem:[%s3] sm:$0xf]
    %v333 = vunpack.c.l.b16 %v283
    %v334 = vunpack.c.l.b16 %v284
    %v335 = vunpack.c.l.b16 %v285
    %v336 = vunpack.c.l.b16 %v286
    %v337 = vunpack.c.l.b16 %v287
    %v338 = vunpack.c.l.b16 %v288
    %v339 = vunpack.c.l.b16 %v289
    %v340 = vunpack.c.l.b16 %v290
    %v341 = vunpack.c.l.b16 %v291
    %v342 = vunpack.c.l.b16 %v292
    %v343 = vunpack.c.l.b16 %v293
    %v344 = vunpack.c.l.b16 %v294
    %v345 = vunpack.c.l.b16 %v295
    %v346 = vunpack.c.l.b16 %v296
    %v347 = vunpack.c.l.b16 %v297
    %v348 = vunpack.c.l.b16 %v298
    %v349 = vpack.c.b16 %v334, %v333
    %v350 = vpack.c.b16 %v336, %v335
    %v351 = vpack.c.b16 %v338, %v337
    %v352 = vpack.c.b16 %v340, %v339
    %v353 = vpack.c.b16 %v342, %v341
    %v354 = vpack.c.b16 %v344, %v343
    %v355 = vpack.c.b16 %v346, %v345
    %v356 = vpack.c.b16 %v348, %v347
    %v381 = vunpack.c.l.b16 %v299
    %v382 = vunpack.c.l.b16 %v300
    %v383 = vunpack.c.l.b16 %v301
    %v384 = vunpack.c.l.b16 %v302
    %v385 = vunpack.c.l.b16 %v303
    %v386 = vunpack.c.l.b16 %v304
    %v387 = vunpack.c.l.b16 %v305
    %v388 = vunpack.c.l.b16 %v306
    %v389 = vunpack.c.l.b16 %v307
    %v390 = vunpack.c.l.b16 %v308
    %v391 = vunpack.c.l.b16 %v309
    %v392 = vunpack.c.l.b16 %v310
    %v393 = vunpack.c.l.b16 %v311
    %v394 = vunpack.c.l.b16 %v312
    %v395 = vunpack.c.l.b16 %v313
    %v396 = vunpack.c.l.b16 %v314
    %v397 = vpack.c.b16 %v382, %v381
    %v398 = vpack.c.b16 %v384, %v383
    %v399 = vpack.c.b16 %v386, %v385
    %v400 = vpack.c.b16 %v388, %v387
    %v401 = vpack.c.b16 %v390, %v389
    %v402 = vpack.c.b16 %v392, %v391
    %v403 = vpack.c.b16 %v394, %v393
    %v404 = vpack.c.b16 %v396, %v395
    %413 = vmatprep.subr.bf16.mxu0 0
    %414 = vmatpush1.bf16.msra.mxu0 %v397
    %415 = vmatprep.subr.bf16.mxu0 0
    %416 = vmatpush1.bf16.msra.mxu0 %v398
    %417 = vmatprep.subr.bf16.mxu0 0
    %418 = vmatpush1.bf16.msra.mxu0 %v399
    %419 = vmatprep.subr.bf16.mxu0 0
    %420 = vmatpush1.bf16.msra.mxu0 %v400
    %421 = vmatprep.subr.bf16.mxu0 0
    %422 = vmatpush1.bf16.msra.mxu0 %v401
    %423 = vmatprep.subr.bf16.mxu0 0
    %424 = vmatpush1.bf16.msra.mxu0 %v402
    %425 = vmatprep.subr.bf16.mxu0 0
    %426 = vmatpush1.bf16.msra.mxu0 %v403
    %427 = vmatprep.subr.bf16.mxu0 0
    %428 = vmatpush1.bf16.msra.mxu0 %v404
    %429 = vmatprep.subr.bf16.mxu0 0
    %430 = vmatpush1.bf16.msra.mxu0 0
    %431 = vmatprep.subr.bf16.mxu0 0
    %432 = vmatpush1.bf16.msra.mxu0 0
    %433 = vmatprep.subr.bf16.mxu0 0
    %434 = vmatpush1.bf16.msra.mxu0 0
    %435 = vmatprep.subr.bf16.mxu0 0
    %436 = vmatpush1.bf16.msra.mxu0 0
    %437 = vmatprep.subr.bf16.mxu0 0
    %438 = vmatpush1.bf16.msra.mxu0 0
    %439 = vmatprep.subr.bf16.mxu0 0
    %440 = vmatpush1.bf16.msra.mxu0 0
    %441 = vmatprep.subr.bf16.mxu0 0
    %442 = vmatpush1.bf16.msra.mxu0 0
    %443 = vmatprep.subr.bf16.mxu0 0
    %444 = vmatpush1.bf16.msra.mxu0 0
    %445 = vmatprep.mubr.bf16.mxu0 0
    %446 = vmatmul.mubr.bf16.gmra.mrb[0].mxu0 %v349
    %v447 = vpop.f32.mrb[0].mxu0
    %v448 = vadd.f32 0.0, %v447
    %v449 = vpop.f32.mrb[0].mxu0
    %v450 = vpop.f32.mrb[0].mxu0
    %v451 = vadd.f32 0.0, %v450
    %v452 = vpop.f32.mrb[0].mxu0
    %453 = vmatprep.mubr.bf16.mxu0 0
    %454 = vmatmul.mubr.bf16.gmra.mrb[0].mxu0 %v350
    %v455 = vpop.f32.mrb[0].mxu0
    %v456 = vadd.f32 0.0, %v455
    %v457 = vpop.f32.mrb[0].mxu0
    %v458 = vpop.f32.mrb[0].mxu0
    %v459 = vadd.f32 0.0, %v458
    %v460 = vpop.f32.mrb[0].mxu0
    %461 = vmatprep.mubr.bf16.mxu0 0
    %462 = vmatmul.mubr.bf16.gmra.mrb[0].mxu0 %v351
    %v463 = vpop.f32.mrb[0].mxu0
    %v464 = vadd.f32 0.0, %v463
    %v465 = vpop.f32.mrb[0].mxu0
    %v466 = vpop.f32.mrb[0].mxu0
    %v467 = vadd.f32 0.0, %v466
    %v468 = vpop.f32.mrb[0].mxu0
    %469 = vmatprep.mubr.bf16.mxu0 0
    %470 = vmatmul.mubr.bf16.gmra.mrb[0].mxu0 %v352
    %v471 = vpop.f32.mrb[0].mxu0
    %v472 = vadd.f32 0.0, %v471
    %v473 = vpop.f32.mrb[0].mxu0
    %v474 = vpop.f32.mrb[0].mxu0
    %v475 = vadd.f32 0.0, %v474
    %v476 = vpop.f32.mrb[0].mxu0
    %477 = vmatprep.mubr.bf16.mxu0 0
    %478 = vmatmul.mubr.bf16.gmra.mrb[0].mxu0 %v353
    %v479 = vpop.f32.mrb[0].mxu0
    %v480 = vadd.f32 0.0, %v479
    %v481 = vpop.f32.mrb[0].mxu0
    %v482 = vpop.f32.mrb[0].mxu0
    %v483 = vadd.f32 0.0, %v482
    %v484 = vpop.f32.mrb[0].mxu0
    %485 = vmatprep.mubr.bf16.mxu0 0
    %486 = vmatmul.mubr.bf16.gmra.mrb[0].mxu0 %v354
    %v487 = vpop.f32.mrb[0].mxu0
    %v488 = vadd.f32 0.0, %v487
    %v489 = vpop.f32.mrb[0].mxu0
    %v490 = vpop.f32.mrb[0].mxu0
    %v491 = vadd.f32 0.0, %v490
    %v492 = vpop.f32.mrb[0].mxu0
    %493 = vmatprep.mubr.bf16.mxu0 0
    %494 = vmatmul.mubr.bf16.gmra.mrb[0].mxu0 %v355
    %v495 = vpop.f32.mrb[0].mxu0
    %v496 = vadd.f32 0.0, %v495
    %v497 = vpop.f32.mrb[0].mxu0
    %v498 = vpop.f32.mrb[0].mxu0
    %v499 = vadd.f32 0.0, %v498
    %v500 = vpop.f32.mrb[0].mxu0
    %501 = vmatprep.mubr.bf16.mxu0 0
    %502 = vmatmul.mubr.bf16.gmra.mrb[0].mxu0 %v356
    %v503 = vpop.f32.mrb[0].mxu0
    %v504 = vadd.f32 0.0, %v503
    %v505 = vpop.f32.mrb[0].mxu0
    %v506 = vpop.f32.mrb[0].mxu0
    %v507 = vadd.f32 0.0, %v506
    %v508 = vpop.f32.mrb[0].mxu0
    %509 = vdwg.mxu0
    %v510 = vpack.c.bf16 %v451, %v448
    %v511 = vpack.c.bf16 %v459, %v456
    %v512 = vpack.c.bf16 %v467, %v464
    %v513 = vpack.c.bf16 %v475, %v472
    %v514 = vpack.c.bf16 %v483, %v480
    %v515 = vpack.c.bf16 %v491, %v488
    %v516 = vpack.c.bf16 %v499, %v496
    %v517 = vpack.c.bf16 %v507, %v504
    %v518 = vld [vmem:[#allocation8] sm:$0xf]
    %v519 = vld [vmem:[#allocation8 + $0x4] sm:$0xf]
    %v520 = vld [vmem:[#allocation8 + $0x8] sm:$0xf]
    %v521 = vld [vmem:[#allocation8 + $0xc] sm:$0xf]
    %v522 = vld [vmem:[#allocation8 + $0x10] sm:$0xf]
    %v523 = vld [vmem:[#allocation8 + $0x14] sm:$0xf]
    %v524 = vld [vmem:[#allocation8 + $0x18] sm:$0xf]
    %v525 = vld [vmem:[#allocation8 + $0x1c] sm:$0xf]
    %v526 = vld [vmem:[#allocation8 + $0x20] sm:$0xf]
    %v527 = vld [vmem:[#allocation8 + $0x24] sm:$0xf]
    %v528 = vld [vmem:[#allocation8 + $0x28] sm:$0xf]
    %v529 = vld [vmem:[#allocation8 + $0x2c] sm:$0xf]
    %v530 = vld [vmem:[#allocation8 + $0x30] sm:$0xf]
    %v531 = vld [vmem:[#allocation8 + $0x34] sm:$0xf]
    %v532 = vld [vmem:[#allocation8 + $0x38] sm:$0xf]
    %v533 = vld [vmem:[#allocation8 + $0x3c] sm:$0xf]
    %v534 = vld [vmem:[#allocation10] sm:$0x1]
    %v536 = vlaneseq
    %v537 = vshrl.u32 %v536, 7
    %v538 = vsub.s32 0, %v537
    %v539 = vrot.slane %v534, %v538
    %v557 = vunpack.c.l.b16 %v518
    %v558 = vunpack.c.l.b16 %v519
    %v559 = vunpack.c.l.b16 %v520
    %v560 = vunpack.c.l.b16 %v521
    %v561 = vunpack.c.l.b16 %v522
    %v562 = vunpack.c.l.b16 %v523
    %v563 = vunpack.c.l.b16 %v524
    %v564 = vunpack.c.l.b16 %v525
    %v565 = vunpack.c.l.b16 %v526
    %v566 = vunpack.c.l.b16 %v527
    %v567 = vunpack.c.l.b16 %v528
    %v568 = vunpack.c.l.b16 %v529
    %v569 = vunpack.c.l.b16 %v530
    %v570 = vunpack.c.l.b16 %v531
    %v571 = vunpack.c.l.b16 %v532
    %v572 = vunpack.c.l.b16 %v533
    %v573 = vpack.c.b16 %v558, %v557
    %v574 = vpack.c.b16 %v560, %v559
    %v575 = vpack.c.b16 %v562, %v561
    %v576 = vpack.c.b16 %v564, %v563
    %v577 = vpack.c.b16 %v566, %v565
    %v578 = vpack.c.b16 %v568, %v567
    %v579 = vpack.c.b16 %v570, %v569
    %v580 = vpack.c.b16 %v572, %v571
    %589 = vmatprep.subr.bf16.mxu0 0
    %590 = vmatpush1.bf16.msra.mxu0 %v573
    %591 = vmatprep.subr.bf16.mxu0 0
    %592 = vmatpush1.bf16.msra.mxu0 %v574
    %593 = vmatprep.subr.bf16.mxu0 0
    %594 = vmatpush1.bf16.msra.mxu0 %v575
    %595 = vmatprep.subr.bf16.mxu0 0
    %596 = vmatpush1.bf16.msra.mxu0 %v576
    %597 = vmatprep.subr.bf16.mxu0 0
    %598 = vmatpush1.bf16.msra.mxu0 %v577
    %599 = vmatprep.subr.bf16.mxu0 0
    %600 = vmatpush1.bf16.msra.mxu0 %v578
    %601 = vmatprep.subr.bf16.mxu0 0
    %602 = vmatpush1.bf16.msra.mxu0 %v579
    %603 = vmatprep.subr.bf16.mxu0 0
    %604 = vmatpush1.bf16.msra.mxu0 %v580
    %605 = vmatprep.subr.bf16.mxu0 0
    %606 = vmatpush1.bf16.msra.mxu0 0
    %607 = vmatprep.subr.bf16.mxu0 0
    %608 = vmatpush1.bf16.msra.mxu0 0
    %609 = vmatprep.subr.bf16.mxu0 0
    %610 = vmatpush1.bf16.msra.mxu0 0
    %611 = vmatprep.subr.bf16.mxu0 0
    %612 = vmatpush1.bf16.msra.mxu0 0
    %613 = vmatprep.subr.bf16.mxu0 0
    %614 = vmatpush1.bf16.msra.mxu0 0
    %615 = vmatprep.subr.bf16.mxu0 0
    %616 = vmatpush1.bf16.msra.mxu0 0
    %617 = vmatprep.subr.bf16.mxu0 0
    %618 = vmatpush1.bf16.msra.mxu0 0
    %619 = vmatprep.subr.bf16.mxu0 0
    %620 = vmatpush1.bf16.msra.mxu0 0
    %621 = vmatprep.mubr.bf16.mxu0 0
    %622 = vmatmul.mubr.bf16.gmra.mrb[0].mxu0 %v510
    %v623 = vpop.f32.mrb[0].mxu0
    %v624 = vadd.f32 %v539, %v623
    %v625 = vpop.f32.mrb[0].mxu0
    %v626 = vpop.f32.mrb[0].mxu0
    %v627 = vadd.f32 %v539, %v626
    %v628 = vpop.f32.mrb[0].mxu0
    %629 = vmatprep.mubr.bf16.mxu0 0
    %630 = vmatmul.mubr.bf16.gmra.mrb[0].mxu0 %v511
    %v631 = vpop.f32.mrb[0].mxu0
    %v632 = vadd.f32 %v539, %v631
    %v633 = vpop.f32.mrb[0].mxu0
    %v634 = vpop.f32.mrb[0].mxu0
    %v635 = vadd.f32 %v539, %v634
    %v636 = vpop.f32.mrb[0].mxu0
    %637 = vmatprep.mubr.bf16.mxu0 0
    %638 = vmatmul.mubr.bf16.gmra.mrb[0].mxu0 %v512
    %v639 = vpop.f32.mrb[0].mxu0
    %v640 = vadd.f32 %v539, %v639
    %v641 = vpop.f32.mrb[0].mxu0
    %v642 = vpop.f32.mrb[0].mxu0
    %v643 = vadd.f32 %v539, %v642
    %v644 = vpop.f32.mrb[0].mxu0
    %645 = vmatprep.mubr.bf16.mxu0 0
    %646 = vmatmul.mubr.bf16.gmra.mrb[0].mxu0 %v513
    %v647 = vpop.f32.mrb[0].mxu0
    %v648 = vadd.f32 %v539, %v647
    %v649 = vpop.f32.mrb[0].mxu0
    %v650 = vpop.f32.mrb[0].mxu0
    %v651 = vadd.f32 %v539, %v650
    %v652 = vpop.f32.mrb[0].mxu0
    %653 = vmatprep.mubr.bf16.mxu0 0
    %654 = vmatmul.mubr.bf16.gmra.mrb[0].mxu0 %v514
    %v655 = vpop.f32.mrb[0].mxu0
    %v656 = vadd.f32 %v539, %v655
    %v657 = vpop.f32.mrb[0].mxu0
    %v658 = vpop.f32.mrb[0].mxu0
    %v659 = vadd.f32 %v539, %v658
    %v660 = vpop.f32.mrb[0].mxu0
    %661 = vmatprep.mubr.bf16.mxu0 0
    %662 = vmatmul.mubr.bf16.gmra.mrb[0].mxu0 %v515
    %v663 = vpop.f32.mrb[0].mxu0
    %v664 = vadd.f32 %v539, %v663
    %v665 = vpop.f32.mrb[0].mxu0
    %v666 = vpop.f32.mrb[0].mxu0
    %v667 = vadd.f32 %v539, %v666
    %v668 = vpop.f32.mrb[0].mxu0
    %669 = vmatprep.mubr.bf16.mxu0 0
    %670 = vmatmul.mubr.bf16.gmra.mrb[0].mxu0 %v516
    %v671 = vpop.f32.mrb[0].mxu0
    %v672 = vadd.f32 %v539, %v671
    %v673 = vpop.f32.mrb[0].mxu0
    %v674 = vpop.f32.mrb[0].mxu0
    %v675 = vadd.f32 %v539, %v674
    %v676 = vpop.f32.mrb[0].mxu0
    %677 = vmatprep.mubr.bf16.mxu0 0
    %678 = vmatmul.mubr.bf16.gmra.mrb[0].mxu0 %v517
    %v679 = vpop.f32.mrb[0].mxu0
    %v680 = vadd.f32 %v539, %v679
    %v681 = vpop.f32.mrb[0].mxu0
    %v682 = vpop.f32.mrb[0].mxu0
    %v683 = vadd.f32 %v539, %v682
    %v684 = vpop.f32.mrb[0].mxu0
    %685 = vdwg.mxu0
    %v686 = vmax.f32 %v624, 0.0
    %v687 = vmax.f32 %v627, 0.0
    %v688 = vmax.f32 %v632, 0.0
    %v689 = vmax.f32 %v635, 0.0
    %v690 = vmax.f32 %v640, 0.0
    %v691 = vmax.f32 %v643, 0.0
    %v692 = vmax.f32 %v648, 0.0
    %v693 = vmax.f32 %v651, 0.0
    %v694 = vmax.f32 %v656, 0.0
    %v695 = vmax.f32 %v659, 0.0
    %v696 = vmax.f32 %v664, 0.0
    %v697 = vmax.f32 %v667, 0.0
    %v698 = vmax.f32 %v672, 0.0
    %v699 = vmax.f32 %v675, 0.0
    %v700 = vmax.f32 %v680, 0.0
    %v701 = vmax.f32 %v683, 0.0
    %v702 = vpack.c.bf16 %v687, %v686
    %v703 = vpack.c.bf16 %v689, %v688
    %v704 = vpack.c.bf16 %v691, %v690
    %v705 = vpack.c.bf16 %v693, %v692
    %v706 = vpack.c.bf16 %v695, %v694
    %v707 = vpack.c.bf16 %v697, %v696
    %v708 = vpack.c.bf16 %v699, %v698
    %v709 = vpack.c.bf16 %v701, %v700
    %v710 = vld [vmem:[#allocation11] sm:$0xf]
    %v711 = vld [vmem:[#allocation11 + $0x4] sm:$0xf]
    %v712 = vld [vmem:[#allocation11 + $0x8] sm:$0xf]
    %v713 = vld [vmem:[#allocation11 + $0xc] sm:$0xf]
    %v714 = vld [vmem:[#allocation11 + $0x10] sm:$0xf]
    %v715 = vld [vmem:[#allocation11 + $0x14] sm:$0xf]
    %v716 = vld [vmem:[#allocation11 + $0x18] sm:$0xf]
    %v717 = vld [vmem:[#allocation11 + $0x1c] sm:$0xf]
    %v718 = vld [vmem:[#allocation11 + $0x20] sm:$0xf]
    %v719 = vld [vmem:[#allocation11 + $0x24] sm:$0xf]
    %v720 = vld [vmem:[#allocation11 + $0x28] sm:$0xf]
    %v721 = vld [vmem:[#allocation11 + $0x2c] sm:$0xf]
    %v722 = vld [vmem:[#allocation11 + $0x30] sm:$0xf]
    %v723 = vld [vmem:[#allocation11 + $0x34] sm:$0xf]
    %v724 = vld [vmem:[#allocation11 + $0x38] sm:$0xf]
    %v725 = vld [vmem:[#allocation11 + $0x3c] sm:$0xf]
    %v726 = vld [vmem:[#allocation13] sm:$0x1]
    %v728 = vlaneseq
    %v729 = vshrl.u32 %v728, 7
    %v730 = vsub.s32 0, %v729
    %v731 = vrot.slane %v726, %v730
    %v749 = vunpack.c.l.b16 %v710
    %v750 = vunpack.c.l.b16 %v711
    %v751 = vunpack.c.l.b16 %v712
    %v752 = vunpack.c.l.b16 %v713
    %v753 = vunpack.c.l.b16 %v714
    %v754 = vunpack.c.l.b16 %v715
    %v755 = vunpack.c.l.b16 %v716
    %v756 = vunpack.c.l.b16 %v717
    %v757 = vunpack.c.l.b16 %v718
    %v758 = vunpack.c.l.b16 %v719
    %v759 = vunpack.c.l.b16 %v720
    %v760 = vunpack.c.l.b16 %v721
    %v761 = vunpack.c.l.b16 %v722
    %v762 = vunpack.c.l.b16 %v723
    %v763 = vunpack.c.l.b16 %v724
    %v764 = vunpack.c.l.b16 %v725
    %v765 = vpack.c.b16 %v750, %v749
    %v766 = vpack.c.b16 %v752, %v751
    %v767 = vpack.c.b16 %v754, %v753
    %v768 = vpack.c.b16 %v756, %v755
    %v769 = vpack.c.b16 %v758, %v757
    %v770 = vpack.c.b16 %v760, %v759
    %v771 = vpack.c.b16 %v762, %v761
    %v772 = vpack.c.b16 %v764, %v763
    %781 = vmatprep.subr.bf16.mxu0 0
    %782 = vmatpush1.bf16.msra.mxu0 %v765
    %783 = vmatprep.subr.bf16.mxu0 0
    %784 = vmatpush1.bf16.msra.mxu0 %v766
    %785 = vmatprep.subr.bf16.mxu0 0
    %786 = vmatpush1.bf16.msra.mxu0 %v767
    %787 = vmatprep.subr.bf16.mxu0 0
    %788 = vmatpush1.bf16.msra.mxu0 %v768
    %789 = vmatprep.subr.bf16.mxu0 0
    %790 = vmatpush1.bf16.msra.mxu0 %v769
    %791 = vmatprep.subr.bf16.mxu0 0
    %792 = vmatpush1.bf16.msra.mxu0 %v770
    %793 = vmatprep.subr.bf16.mxu0 0
    %794 = vmatpush1.bf16.msra.mxu0 %v771
    %795 = vmatprep.subr.bf16.mxu0 0
    %796 = vmatpush1.bf16.msra.mxu0 %v772
    %797 = vmatprep.subr.bf16.mxu0 0
    %798 = vmatpush1.bf16.msra.mxu0 0
    %799 = vmatprep.subr.bf16.mxu0 0
    %800 = vmatpush1.bf16.msra.mxu0 0
    %801 = vmatprep.subr.bf16.mxu0 0
    %802 = vmatpush1.bf16.msra.mxu0 0
    %803 = vmatprep.subr.bf16.mxu0 0
    %804 = vmatpush1.bf16.msra.mxu0 0
    %805 = vmatprep.subr.bf16.mxu0 0
    %806 = vmatpush1.bf16.msra.mxu0 0
    %807 = vmatprep.subr.bf16.mxu0 0
    %808 = vmatpush1.bf16.msra.mxu0 0
    %809 = vmatprep.subr.bf16.mxu0 0
    %810 = vmatpush1.bf16.msra.mxu0 0
    %811 = vmatprep.subr.bf16.mxu0 0
    %812 = vmatpush1.bf16.msra.mxu0 0
    %813 = vmatprep.mubr.bf16.mxu0 0
    %814 = vmatmul.mubr.bf16.gmra.mrb[0].mxu0 %v702
    %v815 = vpop.f32.mrb[0].mxu0
    %v816 = vadd.f32 %v731, %v815
    %v817 = vpop.f32.mrb[0].mxu0
    %v818 = vpop.f32.mrb[0].mxu0
    %v819 = vadd.f32 %v731, %v818
    %v820 = vpop.f32.mrb[0].mxu0
    %821 = vmatprep.mubr.bf16.mxu0 0
    %822 = vmatmul.mubr.bf16.gmra.mrb[0].mxu0 %v703
    %v823 = vpop.f32.mrb[0].mxu0
    %v824 = vadd.f32 %v731, %v823
    %v825 = vpop.f32.mrb[0].mxu0
    %v826 = vpop.f32.mrb[0].mxu0
    %v827 = vadd.f32 %v731, %v826
    %v828 = vpop.f32.mrb[0].mxu0
    %829 = vmatprep.mubr.bf16.mxu0 0
    %830 = vmatmul.mubr.bf16.gmra.mrb[0].mxu0 %v704
    %v831 = vpop.f32.mrb[0].mxu0
    %v832 = vadd.f32 %v731, %v831
    %v833 = vpop.f32.mrb[0].mxu0
    %v834 = vpop.f32.mrb[0].mxu0
    %v835 = vadd.f32 %v731, %v834
    %v836 = vpop.f32.mrb[0].mxu0
    %837 = vmatprep.mubr.bf16.mxu0 0
    %838 = vmatmul.mubr.bf16.gmra.mrb[0].mxu0 %v705
    %v839 = vpop.f32.mrb[0].mxu0
    %v840 = vadd.f32 %v731, %v839
    %v841 = vpop.f32.mrb[0].mxu0
    %v842 = vpop.f32.mrb[0].mxu0
    %v843 = vadd.f32 %v731, %v842
    %v844 = vpop.f32.mrb[0].mxu0
    %845 = vmatprep.mubr.bf16.mxu0 0
    %846 = vmatmul.mubr.bf16.gmra.mrb[0].mxu0 %v706
    %v847 = vpop.f32.mrb[0].mxu0
    %v848 = vadd.f32 %v731, %v847
    %v849 = vpop.f32.mrb[0].mxu0
    %v850 = vpop.f32.mrb[0].mxu0
    %v851 = vadd.f32 %v731, %v850
    %v852 = vpop.f32.mrb[0].mxu0
    %853 = vmatprep.mubr.bf16.mxu0 0
    %854 = vmatmul.mubr.bf16.gmra.mrb[0].mxu0 %v707
    %v855 = vpop.f32.mrb[0].mxu0
    %v856 = vadd.f32 %v731, %v855
    %v857 = vpop.f32.mrb[0].mxu0
    %v858 = vpop.f32.mrb[0].mxu0
    %v859 = vadd.f32 %v731, %v858
    %v860 = vpop.f32.mrb[0].mxu0
    %861 = vmatprep.mubr.bf16.mxu0 0
    %862 = vmatmul.mubr.bf16.gmra.mrb[0].mxu0 %v708
    %v863 = vpop.f32.mrb[0].mxu0
    %v864 = vadd.f32 %v731, %v863
    %v865 = vpop.f32.mrb[0].mxu0
    %v866 = vpop.f32.mrb[0].mxu0
    %v867 = vadd.f32 %v731, %v866
    %v868 = vpop.f32.mrb[0].mxu0
    %869 = vmatprep.mubr.bf16.mxu0 0
    %870 = vmatmul.mubr.bf16.gmra.mrb[0].mxu0 %v709
    %v871 = vpop.f32.mrb[0].mxu0
    %v872 = vadd.f32 %v731, %v871
    %v873 = vpop.f32.mrb[0].mxu0
    %v874 = vpop.f32.mrb[0].mxu0
    %v875 = vadd.f32 %v731, %v874
    %v876 = vpop.f32.mrb[0].mxu0
    %877 = vdwg.mxu0
    %v878 = vmax.f32 %v816, 0.0
    %v879 = vmax.f32 %v819, 0.0
    %v880 = vmax.f32 %v824, 0.0
    %v881 = vmax.f32 %v827, 0.0
    %v882 = vmax.f32 %v832, 0.0
    %v883 = vmax.f32 %v835, 0.0
    %v884 = vmax.f32 %v840, 0.0
    %v885 = vmax.f32 %v843, 0.0
    %v886 = vmax.f32 %v848, 0.0
    %v887 = vmax.f32 %v851, 0.0
    %v888 = vmax.f32 %v856, 0.0
    %v889 = vmax.f32 %v859, 0.0
    %v890 = vmax.f32 %v864, 0.0
    %v891 = vmax.f32 %v867, 0.0
    %v892 = vmax.f32 %v872, 0.0
    %v893 = vmax.f32 %v875, 0.0
    %894 = vmatprep.subr.mxu0 0.0
    %895 = vmatpush1.msra.mxu0 %v878
    %896 = vmatprep.subr.mxu0 0.0
    %897 = vmatpush1.msra.mxu0 %v879
    %898 = vmatprep.subr.mxu0 0.0
    %899 = vmatpush1.msra.mxu0 %v880
    %900 = vmatprep.subr.mxu0 0.0
    %901 = vmatpush1.msra.mxu0 %v881
    %902 = vmatprep.subr.mxu0 0.0
    %903 = vmatpush1.msra.mxu0 %v882
    %904 = vmatprep.subr.mxu0 0.0
    %905 = vmatpush1.msra.mxu0 %v883
    %906 = vmatprep.subr.mxu0 0.0
    %907 = vmatpush1.msra.mxu0 %v884
    %908 = vmatprep.subr.mxu0 0.0
    %909 = vmatpush1.msra.mxu0 %v885
    %910 = vmatprep.subr.mxu0 0.0
    %911 = vmatpush1.msra.mxu0 %v886
    %912 = vmatprep.subr.mxu0 0.0
    %913 = vmatpush1.msra.mxu0 %v887
    %914 = vmatprep.subr.mxu0 0.0
    %915 = vmatpush1.msra.mxu0 %v888
    %916 = vmatprep.subr.mxu0 0.0
    %917 = vmatpush1.msra.mxu0 %v889
    %918 = vmatprep.subr.mxu0 0.0
    %919 = vmatpush1.msra.mxu0 %v890
    %920 = vmatprep.subr.mxu0 0.0
    %921 = vmatpush1.msra.mxu0 %v891
    %922 = vmatprep.subr.mxu0 0.0
    %923 = vmatpush1.msra.mxu0 %v892
    %924 = vmatprep.subr.mxu0 0.0
    %925 = vmatpush1.msra.mxu0 %v893
    %926 = vmatprep.subr.mxu0 0.0
    %927 = vmatpush1.msra.mxu0 0.0
    %928 = vmatprep.subr.mxu0 0.0
    %929 = vmatpush1.msra.mxu0 0.0
    %930 = vmatprep.subr.mxu0 0.0
    %931 = vmatpush1.msra.mxu0 0.0
    %932 = vmatprep.subr.mxu0 0.0
    %933 = vmatpush1.msra.mxu0 0.0
    %934 = vmatprep.subr.mxu0 0.0
    %935 = vmatpush1.msra.mxu0 0.0
    %936 = vmatprep.subr.mxu0 0.0
    %937 = vmatpush1.msra.mxu0 0.0
    %938 = vmatprep.subr.mxu0 0.0
    %939 = vmatpush1.msra.mxu0 0.0
    %940 = vmatprep.subr.mxu0 0.0
    %941 = vmatpush1.msra.mxu0 0.0
    %942 = vmatprep.subr.mxu0 0.0
    %943 = vmatpush1.msra.mxu0 0.0
    %944 = vmatprep.subr.mxu0 0.0
    %945 = vmatpush1.msra.mxu0 0.0
    %946 = vmatprep.subr.mxu0 0.0
    %947 = vmatpush1.msra.mxu0 0.0
    %948 = vmatprep.subr.mxu0 0.0
    %949 = vmatpush1.msra.mxu0 0.0
    %950 = vmatprep.subr.mxu0 0.0
    %951 = vmatpush1.msra.mxu0 0.0
    %952 = vmatprep.subr.mxu0 0.0
    %953 = vmatpush1.msra.mxu0 0.0
    %954 = vmatprep.subr.mxu0 0.0
    %955 = vmatpush1.msra.mxu0 0.0
    %956 = vmatprep.subr.mxu0 0.0
    %957 = vmatpush1.msra.mxu0 0.0
    %958 = vmatprep.mubr.f32.mxu0 0.0
    %959 = vmatmul.mubr.f32.gmra.mrb[0].mxu0 %v315
    %v960 = vpop.f32.mrb[0].mxu0
    %v961 = vadd.f32 0.0, %v960
    %v962 = vpop.f32.mrb[0].mxu0
    %963 = vdwg.mxu0
    %v964 = vmul.f32 %v878, %v878
    %v965 = vmul.f32 %v879, %v879
    %v966 = vmul.f32 %v880, %v880
    %v967 = vmul.f32 %v881, %v881
    %v968 = vmul.f32 %v882, %v882
    %v969 = vmul.f32 %v883, %v883
    %v970 = vmul.f32 %v884, %v884
    %v971 = vmul.f32 %v885, %v885
    %v972 = vmul.f32 %v886, %v886
    %v973 = vmul.f32 %v887, %v887
    %v974 = vmul.f32 %v888, %v888
    %v975 = vmul.f32 %v889, %v889
    %v976 = vmul.f32 %v890, %v890
    %v977 = vmul.f32 %v891, %v891
    %v978 = vmul.f32 %v892, %v892
    %v979 = vmul.f32 %v893, %v893
    %980 = vmatprep.subr.mxu0 0.0
    %981 = vmatpush1.msra.mxu0 %v964
    %982 = vmatprep.subr.mxu0 0.0
    %983 = vmatpush1.msra.mxu0 %v965
    %984 = vmatprep.subr.mxu0 0.0
    %985 = vmatpush1.msra.mxu0 %v966
    %986 = vmatprep.subr.mxu0 0.0
    %987 = vmatpush1.msra.mxu0 %v967
    %988 = vmatprep.subr.mxu0 0.0
    %989 = vmatpush1.msra.mxu0 %v968
    %990 = vmatprep.subr.mxu0 0.0
    %991 = vmatpush1.msra.mxu0 %v969
    %992 = vmatprep.subr.mxu0 0.0
    %993 = vmatpush1.msra.mxu0 %v970
    %994 = vmatprep.subr.mxu0 0.0
    %995 = vmatpush1.msra.mxu0 %v971
    %996 = vmatprep.subr.mxu0 0.0
    %997 = vmatpush1.msra.mxu0 %v972
    %998 = vmatprep.subr.mxu0 0.0
    %999 = vmatpush1.msra.mxu0 %v973
    %1000 = vmatprep.subr.mxu0 0.0
    %1001 = vmatpush1.msra.mxu0 %v974
    %1002 = vmatprep.subr.mxu0 0.0
    %1003 = vmatpush1.msra.mxu0 %v975
    %1004 = vmatprep.subr.mxu0 0.0
    %1005 = vmatpush1.msra.mxu0 %v976
    %1006 = vmatprep.subr.mxu0 0.0
    %1007 = vmatpush1.msra.mxu0 %v977
    %1008 = vmatprep.subr.mxu0 0.0
    %1009 = vmatpush1.msra.mxu0 %v978
    %1010 = vmatprep.subr.mxu0 0.0
    %1011 = vmatpush1.msra.mxu0 %v979
    %1012 = vmatprep.subr.mxu0 0.0
    %1013 = vmatpush1.msra.mxu0 0.0
    %1014 = vmatprep.subr.mxu0 0.0
    %1015 = vmatpush1.msra.mxu0 0.0
    %1016 = vmatprep.subr.mxu0 0.0
    %1017 = vmatpush1.msra.mxu0 0.0
    %1018 = vmatprep.subr.mxu0 0.0
    %1019 = vmatpush1.msra.mxu0 0.0
    %1020 = vmatprep.subr.mxu0 0.0
    %1021 = vmatpush1.msra.mxu0 0.0
    %1022 = vmatprep.subr.mxu0 0.0
    %1023 = vmatpush1.msra.mxu0 0.0
    %1024 = vmatprep.subr.mxu0 0.0
    %1025 = vmatpush1.msra.mxu0 0.0
    %1026 = vmatprep.subr.mxu0 0.0
    %1027 = vmatpush1.msra.mxu0 0.0
    %1028 = vmatprep.subr.mxu0 0.0
    %1029 = vmatpush1.msra.mxu0 0.0
    %1030 = vmatprep.subr.mxu0 0.0
    %1031 = vmatpush1.msra.mxu0 0.0
    %1032 = vmatprep.subr.mxu0 0.0
    %1033 = vmatpush1.msra.mxu0 0.0
    %1034 = vmatprep.subr.mxu0 0.0
    %1035 = vmatpush1.msra.mxu0 0.0
    %1036 = vmatprep.subr.mxu0 0.0
    %1037 = vmatpush1.msra.mxu0 0.0
    %1038 = vmatprep.subr.mxu0 0.0
    %1039 = vmatpush1.msra.mxu0 0.0
    %1040 = vmatprep.subr.mxu0 0.0
    %1041 = vmatpush1.msra.mxu0 0.0
    %1042 = vmatprep.subr.mxu0 0.0
    %1043 = vmatpush1.msra.mxu0 0.0
    %1044 = vmatprep.mubr.f32.mxu0 0.0
    %1045 = vmatmul.mubr.f32.gmra.mrb[0].mxu0 %v315
    %v1046 = vpop.f32.mrb[0].mxu0
    %v1047 = vadd.f32 0.0, %v1046
    %v1048 = vpop.f32.mrb[0].mxu0
    %1049 = vdwg.mxu0
    %v1050 = vmul.f32 %v961, %v961
    %v1051 = vsub.f32 %v1047, %v1050
    %v1052 = vmax.f32 %v1051, 0.0
    %v1053 = vlaneseq
    %v1054 = vshrl.u32 %v1053, 7
    %v1055 = vsub.s32 0, %v1054
    %v1056 = vrot.slane %v961, %v1055
    %v1057 = vsub.f32 %v878, %v1056
    %v1058 = vsub.f32 %v879, %v1056
    %v1059 = vsub.f32 %v880, %v1056
    %v1060 = vsub.f32 %v881, %v1056
    %v1061 = vsub.f32 %v882, %v1056
    %v1062 = vsub.f32 %v883, %v1056
    %v1063 = vsub.f32 %v884, %v1056
    %v1064 = vsub.f32 %v885, %v1056
    %v1065 = vsub.f32 %v886, %v1056
    %v1066 = vsub.f32 %v887, %v1056
    %v1067 = vsub.f32 %v888, %v1056
    %v1068 = vsub.f32 %v889, %v1056
    %v1069 = vsub.f32 %v890, %v1056
    %v1070 = vsub.f32 %v891, %v1056
    %v1071 = vsub.f32 %v892, %v1056
    %v1072 = vsub.f32 %v893, %v1056
    %v1073 = vadd.f32 %v1052, 1e-05
    %v1074 = vrsqrt.pop %v1073
    %v1075 = vlaneseq
    %v1076 = vshrl.u32 %v1075, 7
    %v1077 = vsub.s32 0, %v1076
    %v1078 = vrot.slane %v1074, %v1077
    %v1079 = vmul.f32 %v1057, %v1078
    %v1080 = vmul.f32 %v1058, %v1078
    %v1081 = vmul.f32 %v1059, %v1078
    %v1082 = vmul.f32 %v1060, %v1078
    %v1083 = vmul.f32 %v1061, %v1078
    %v1084 = vmul.f32 %v1062, %v1078
    %v1085 = vmul.f32 %v1063, %v1078
    %v1086 = vmul.f32 %v1064, %v1078
    %v1087 = vmul.f32 %v1065, %v1078
    %v1088 = vmul.f32 %v1066, %v1078
    %v1089 = vmul.f32 %v1067, %v1078
    %v1090 = vmul.f32 %v1068, %v1078
    %v1091 = vmul.f32 %v1069, %v1078
    %v1092 = vmul.f32 %v1070, %v1078
    %v1093 = vmul.f32 %v1071, %v1078
    %v1094 = vmul.f32 %v1072, %v1078
    %v1095 = vld [vmem:[#allocation14] sm:$0x1]
    %v1097 = vlaneseq
    %v1098 = vshrl.u32 %v1097, 7
    %v1099 = vsub.s32 0, %v1098
    %v1100 = vrot.slane %v1095, %v1099
    %v1102 = vmul.f32 %v1079, %v1100
    %v1103 = vmul.f32 %v1080, %v1100
    %v1104 = vmul.f32 %v1081, %v1100
    %v1105 = vmul.f32 %v1082, %v1100
    %v1106 = vmul.f32 %v1083, %v1100
    %v1107 = vmul.f32 %v1084, %v1100
    %v1108 = vmul.f32 %v1085, %v1100
    %v1109 = vmul.f32 %v1086, %v1100
    %v1110 = vmul.f32 %v1087, %v1100
    %v1111 = vmul.f32 %v1088, %v1100
    %v1112 = vmul.f32 %v1089, %v1100
    %v1113 = vmul.f32 %v1090, %v1100
    %v1114 = vmul.f32 %v1091, %v1100
    %v1115 = vmul.f32 %v1092, %v1100
    %v1116 = vmul.f32 %v1093, %v1100
    %v1117 = vmul.f32 %v1094, %v1100
    %v1118 = vld [vmem:[#allocation16] sm:$0x1]
    %v1120 = vlaneseq
    %v1121 = vshrl.u32 %v1120, 7
    %v1122 = vsub.s32 0, %v1121
    %v1123 = vrot.slane %v1118, %v1122
    %v1125 = vadd.f32 %v1102, %v1123
    %v1126 = vadd.f32 %v1103, %v1123
    %v1127 = vadd.f32 %v1104, %v1123
    %v1128 = vadd.f32 %v1105, %v1123
    %v1129 = vadd.f32 %v1106, %v1123
    %v1130 = vadd.f32 %v1107, %v1123
    %v1131 = vadd.f32 %v1108, %v1123
    %v1132 = vadd.f32 %v1109, %v1123
    %v1133 = vadd.f32 %v1110, %v1123
    %v1134 = vadd.f32 %v1111, %v1123
    %v1135 = vadd.f32 %v1112, %v1123
    %v1136 = vadd.f32 %v1113, %v1123
    %v1137 = vadd.f32 %v1114, %v1123
    %v1138 = vadd.f32 %v1115, %v1123
    %v1139 = vadd.f32 %v1116, %v1123
    %v1140 = vadd.f32 %v1117, %v1123
    %1141 = vmatprep.subr.mxu0 0.0
    %1142 = vmatpush1.msra.mxu0 %v1125
    %1143 = vmatprep.subr.mxu0 0.0
    %1144 = vmatpush1.msra.mxu0 %v1126
    %1145 = vmatprep.subr.mxu0 0.0
    %1146 = vmatpush1.msra.mxu0 %v1127
    %1147 = vmatprep.subr.mxu0 0.0
    %1148 = vmatpush1.msra.mxu0 %v1128
    %1149 = vmatprep.subr.mxu0 0.0
    %1150 = vmatpush1.msra.mxu0 %v1129
    %1151 = vmatprep.subr.mxu0 0.0
    %1152 = vmatpush1.msra.mxu0 %v1130
    %1153 = vmatprep.subr.mxu0 0.0
    %1154 = vmatpush1.msra.mxu0 %v1131
    %1155 = vmatprep.subr.mxu0 0.0
    %1156 = vmatpush1.msra.mxu0 %v1132
    %1157 = vmatprep.subr.mxu0 0.0
    %1158 = vmatpush1.msra.mxu0 %v1133
    %1159 = vmatprep.subr.mxu0 0.0
    %1160 = vmatpush1.msra.mxu0 %v1134
    %1161 = vmatprep.subr.mxu0 0.0
    %1162 = vmatpush1.msra.mxu0 %v1135
    %1163 = vmatprep.subr.mxu0 0.0
    %1164 = vmatpush1.msra.mxu0 %v1136
    %1165 = vmatprep.subr.mxu0 0.0
    %1166 = vmatpush1.msra.mxu0 %v1137
    %1167 = vmatprep.subr.mxu0 0.0
    %1168 = vmatpush1.msra.mxu0 %v1138
    %1169 = vmatprep.subr.mxu0 0.0
    %1170 = vmatpush1.msra.mxu0 %v1139
    %1171 = vmatprep.subr.mxu0 0.0
    %1172 = vmatpush1.msra.mxu0 %v1140
    %1173 = vmatprep.subr.mxu0 0.0
    %1174 = vmatpush1.msra.mxu0 0.0
    %1175 = vmatprep.subr.mxu0 0.0
    %1176 = vmatpush1.msra.mxu0 0.0
    %1177 = vmatprep.subr.mxu0 0.0
    %1178 = vmatpush1.msra.mxu0 0.0
    %1179 = vmatprep.subr.mxu0 0.0
    %1180 = vmatpush1.msra.mxu0 0.0
    %1181 = vmatprep.subr.mxu0 0.0
    %1182 = vmatpush1.msra.mxu0 0.0
    %1183 = vmatprep.subr.mxu0 0.0
    %1184 = vmatpush1.msra.mxu0 0.0
    %1185 = vmatprep.subr.mxu0 0.0
    %1186 = vmatpush1.msra.mxu0 0.0
    %1187 = vmatprep.subr.mxu0 0.0
    %1188 = vmatpush1.msra.mxu0 0.0
    %1189 = vmatprep.subr.mxu0 0.0
    %1190 = vmatpush1.msra.mxu0 0.0
    %1191 = vmatprep.subr.mxu0 0.0
    %1192 = vmatpush1.msra.mxu0 0.0
    %1193 = vmatprep.subr.mxu0 0.0
    %1194 = vmatpush1.msra.mxu0 0.0
    %1195 = vmatprep.subr.mxu0 0.0
    %1196 = vmatpush1.msra.mxu0 0.0
    %1197 = vmatprep.subr.mxu0 0.0
    %1198 = vmatpush1.msra.mxu0 0.0
    %1199 = vmatprep.subr.mxu0 0.0
    %1200 = vmatpush1.msra.mxu0 0.0
    %1201 = vmatprep.subr.mxu0 0.0
    %1202 = vmatpush1.msra.mxu0 0.0
    %1203 = vmatprep.subr.mxu0 0.0
    %1204 = vmatpush1.msra.mxu0 0.0
    %1205 = vmatprep.mubr.f32.mxu0 0.0
    %1206 = vmatmul.mubr.f32.gmra.mrb[0].mxu0 %v316
    %v1207 = vpop.f32.mrb[0].mxu0
    %v1208 = vadd.f32 0.0, %v1207
    %v1209 = vpop.f32.mrb[0].mxu0
    %1210 = vdwg.mxu0
    %1211 = vst [vmem:[#allocation29] sm:$0xf] %v1208
    %v1212 = vpack.c.bf16 %v1126, %v1125
    %v1213 = vpack.c.bf16 %v1128, %v1127
    %v1214 = vpack.c.bf16 %v1130, %v1129
    %v1215 = vpack.c.bf16 %v1132, %v1131
    %v1216 = vpack.c.bf16 %v1134, %v1133
    %v1217 = vpack.c.bf16 %v1136, %v1135
    %v1218 = vpack.c.bf16 %v1138, %v1137
    %v1219 = vpack.c.bf16 %v1140, %v1139
    %1220 = vmatprep.subr.bf16.mxu0 0
    %1221 = vmatpush1.bf16.msra.mxu0 %v1212
    %1222 = vmatprep.subr.bf16.mxu0 0
    %1223 = vmatpush1.bf16.msra.mxu0 %v1213
    %1224 = vmatprep.subr.bf16.mxu0 0
    %1225 = vmatpush1.bf16.msra.mxu0 %v1214
    %1226 = vmatprep.subr.bf16.mxu0 0
    %1227 = vmatpush1.bf16.msra.mxu0 %v1215
    %1228 = vmatprep.subr.bf16.mxu0 0
    %1229 = vmatpush1.bf16.msra.mxu0 %v1216
    %1230 = vmatprep.subr.bf16.mxu0 0
    %1231 = vmatpush1.bf16.msra.mxu0 %v1217
    %1232 = vmatprep.subr.bf16.mxu0 0
    %1233 = vmatpush1.bf16.msra.mxu0 %v1218
    %1234 = vmatprep.subr.bf16.mxu0 0
    %1235 = vmatpush1.bf16.msra.mxu0 %v1219
    %1236 = vmatprep.subr.bf16.mxu0 0
    %1237 = vmatpush1.bf16.msra.mxu0 0
    %1238 = vmatprep.subr.bf16.mxu0 0
    %1239 = vmatpush1.bf16.msra.mxu0 0
    %1240 = vmatprep.subr.bf16.mxu0 0
    %1241 = vmatpush1.bf16.msra.mxu0 0
    %1242 = vmatprep.subr.bf16.mxu0 0
    %1243 = vmatpush1.bf16.msra.mxu0 0
    %1244 = vmatprep.subr.bf16.mxu0 0
    %1245 = vmatpush1.bf16.msra.mxu0 0
    %1246 = vmatprep.subr.bf16.mxu0 0
    %1247 = vmatpush1.bf16.msra.mxu0 0
    %1248 = vmatprep.subr.bf16.mxu0 0
    %1249 = vmatpush1.bf16.msra.mxu0 0
    %1250 = vmatprep.subr.bf16.mxu0 0
    %1251 = vmatpush1.bf16.msra.mxu0 0
    %1252 = vmatprep.mubr.bf16.mxu0 0
    %1253 = vmatmul.mubr.bf16.gmra.mrb[0].mxu0 %v349
    %v1254 = vpop.f32.mrb[0].mxu0
    %v1255 = vadd.f32 0.0, %v1254
    %v1256 = vpop.f32.mrb[0].mxu0
    %v1257 = vpop.f32.mrb[0].mxu0
    %v1258 = vadd.f32 0.0, %v1257
    %v1259 = vpop.f32.mrb[0].mxu0
    %1260 = vmatprep.mubr.bf16.mxu0 0
    %1261 = vmatmul.mubr.bf16.gmra.mrb[0].mxu0 %v350
    %v1262 = vpop.f32.mrb[0].mxu0
    %v1263 = vadd.f32 0.0, %v1262
    %v1264 = vpop.f32.mrb[0].mxu0
    %v1265 = vpop.f32.mrb[0].mxu0
    %v1266 = vadd.f32 0.0, %v1265
    %v1267 = vpop.f32.mrb[0].mxu0
    %1268 = vmatprep.mubr.bf16.mxu0 0
    %1269 = vmatmul.mubr.bf16.gmra.mrb[0].mxu0 %v351
    %v1270 = vpop.f32.mrb[0].mxu0
    %v1271 = vadd.f32 0.0, %v1270
    %v1272 = vpop.f32.mrb[0].mxu0
    %v1273 = vpop.f32.mrb[0].mxu0
    %v1274 = vadd.f32 0.0, %v1273
    %v1275 = vpop.f32.mrb[0].mxu0
    %1276 = vmatprep.mubr.bf16.mxu0 0
    %1277 = vmatmul.mubr.bf16.gmra.mrb[0].mxu0 %v352
    %v1278 = vpop.f32.mrb[0].mxu0
    %v1279 = vadd.f32 0.0, %v1278
    %v1280 = vpop.f32.mrb[0].mxu0
    %v1281 = vpop.f32.mrb[0].mxu0
    %v1282 = vadd.f32 0.0, %v1281
    %v1283 = vpop.f32.mrb[0].mxu0
    %1284 = vmatprep.mubr.bf16.mxu0 0
    %1285 = vmatmul.mubr.bf16.gmra.mrb[0].mxu0 %v353
    %v1286 = vpop.f32.mrb[0].mxu0
    %v1287 = vadd.f32 0.0, %v1286
    %v1288 = vpop.f32.mrb[0].mxu0
    %v1289 = vpop.f32.mrb[0].mxu0
    %v1290 = vadd.f32 0.0, %v1289
    %v1291 = vpop.f32.mrb[0].mxu0
    %1292 = vmatprep.mubr.bf16.mxu0 0
    %1293 = vmatmul.mubr.bf16.gmra.mrb[0].mxu0 %v354
    %v1294 = vpop.f32.mrb[0].mxu0
    %v1295 = vadd.f32 0.0, %v1294
    %v1296 = vpop.f32.mrb[0].mxu0
    %v1297 = vpop.f32.mrb[0].mxu0
    %v1298 = vadd.f32 0.0, %v1297
    %v1299 = vpop.f32.mrb[0].mxu0
    %1300 = vmatprep.mubr.bf16.mxu0 0
    %1301 = vmatmul.mubr.bf16.gmra.mrb[0].mxu0 %v355
    %v1302 = vpop.f32.mrb[0].mxu0
    %v1303 = vadd.f32 0.0, %v1302
    %v1304 = vpop.f32.mrb[0].mxu0
    %v1305 = vpop.f32.mrb[0].mxu0
    %v1306 = vadd.f32 0.0, %v1305
    %v1307 = vpop.f32.mrb[0].mxu0
    %1308 = vmatprep.mubr.bf16.mxu0 0
    %1309 = vmatmul.mubr.bf16.gmra.mrb[0].mxu0 %v356
    %v1310 = vpop.f32.mrb[0].mxu0
    %v1311 = vadd.f32 0.0, %v1310
    %v1312 = vpop.f32.mrb[0].mxu0
    %v1313 = vpop.f32.mrb[0].mxu0
    %v1314 = vadd.f32 0.0, %v1313
    %v1315 = vpop.f32.mrb[0].mxu0
    %1316 = vdwg.mxu0
    %v1317 = vpack.c.bf16 %v1258, %v1255
    %v1318 = vpack.c.bf16 %v1266, %v1263
    %v1319 = vpack.c.bf16 %v1274, %v1271
    %v1320 = vpack.c.bf16 %v1282, %v1279
    %v1321 = vpack.c.bf16 %v1290, %v1287
    %v1322 = vpack.c.bf16 %v1298, %v1295
    %v1323 = vpack.c.bf16 %v1306, %v1303
    %v1324 = vpack.c.bf16 %v1314, %v1311
    %v1325 = vld [vmem:[#allocation17] sm:$0xf]
    %v1326 = vld [vmem:[#allocation17 + $0x4] sm:$0xf]
    %v1327 = vld [vmem:[#allocation17 + $0x8] sm:$0xf]
    %v1328 = vld [vmem:[#allocation17 + $0xc] sm:$0xf]
    %v1329 = vld [vmem:[#allocation17 + $0x10] sm:$0xf]
    %v1330 = vld [vmem:[#allocation17 + $0x14] sm:$0xf]
    %v1331 = vld [vmem:[#allocation17 + $0x18] sm:$0xf]
    %v1332 = vld [vmem:[#allocation17 + $0x1c] sm:$0xf]
    %v1333 = vld [vmem:[#allocation17 + $0x20] sm:$0xf]
    %v1334 = vld [vmem:[#allocation17 + $0x24] sm:$0xf]
    %v1335 = vld [vmem:[#allocation17 + $0x28] sm:$0xf]
    %v1336 = vld [vmem:[#allocation17 + $0x2c] sm:$0xf]
    %v1337 = vld [vmem:[#allocation17 + $0x30] sm:$0xf]
    %v1338 = vld [vmem:[#allocation17 + $0x34] sm:$0xf]
    %v1339 = vld [vmem:[#allocation17 + $0x38] sm:$0xf]
    %v1340 = vld [vmem:[#allocation17 + $0x3c] sm:$0xf]
    %v1341 = vld [vmem:[#allocation19] sm:$0x1]
    %v1343 = vlaneseq
    %v1344 = vshrl.u32 %v1343, 7
    %v1345 = vsub.s32 0, %v1344
    %v1346 = vrot.slane %v1341, %v1345
    %v1364 = vunpack.c.l.b16 %v1325
    %v1365 = vunpack.c.l.b16 %v1326
    %v1366 = vunpack.c.l.b16 %v1327
    %v1367 = vunpack.c.l.b16 %v1328
    %v1368 = vunpack.c.l.b16 %v1329
    %v1369 = vunpack.c.l.b16 %v1330
    %v1370 = vunpack.c.l.b16 %v1331
    %v1371 = vunpack.c.l.b16 %v1332
    %v1372 = vunpack.c.l.b16 %v1333
    %v1373 = vunpack.c.l.b16 %v1334
    %v1374 = vunpack.c.l.b16 %v1335
    %v1375 = vunpack.c.l.b16 %v1336
    %v1376 = vunpack.c.l.b16 %v1337
    %v1377 = vunpack.c.l.b16 %v1338
    %v1378 = vunpack.c.l.b16 %v1339
    %v1379 = vunpack.c.l.b16 %v1340
    %v1380 = vpack.c.b16 %v1365, %v1364
    %v1381 = vpack.c.b16 %v1367, %v1366
    %v1382 = vpack.c.b16 %v1369, %v1368
    %v1383 = vpack.c.b16 %v1371, %v1370
    %v1384 = vpack.c.b16 %v1373, %v1372
    %v1385 = vpack.c.b16 %v1375, %v1374
    %v1386 = vpack.c.b16 %v1377, %v1376
    %v1387 = vpack.c.b16 %v1379, %v1378
    %1396 = vmatprep.subr.bf16.mxu0 0
    %1397 = vmatpush1.bf16.msra.mxu0 %v1380
    %1398 = vmatprep.subr.bf16.mxu0 0
    %1399 = vmatpush1.bf16.msra.mxu0 %v1381
    %1400 = vmatprep.subr.bf16.mxu0 0
    %1401 = vmatpush1.bf16.msra.mxu0 %v1382
    %1402 = vmatprep.subr.bf16.mxu0 0
    %1403 = vmatpush1.bf16.msra.mxu0 %v1383
    %1404 = vmatprep.subr.bf16.mxu0 0
    %1405 = vmatpush1.bf16.msra.mxu0 %v1384
    %1406 = vmatprep.subr.bf16.mxu0 0
    %1407 = vmatpush1.bf16.msra.mxu0 %v1385
    %1408 = vmatprep.subr.bf16.mxu0 0
    %1409 = vmatpush1.bf16.msra.mxu0 %v1386
    %1410 = vmatprep.subr.bf16.mxu0 0
    %1411 = vmatpush1.bf16.msra.mxu0 %v1387
    %1412 = vmatprep.subr.bf16.mxu0 0
    %1413 = vmatpush1.bf16.msra.mxu0 0
    %1414 = vmatprep.subr.bf16.mxu0 0
    %1415 = vmatpush1.bf16.msra.mxu0 0
    %1416 = vmatprep.subr.bf16.mxu0 0
    %1417 = vmatpush1.bf16.msra.mxu0 0
    %1418 = vmatprep.subr.bf16.mxu0 0
    %1419 = vmatpush1.bf16.msra.mxu0 0
    %1420 = vmatprep.subr.bf16.mxu0 0
    %1421 = vmatpush1.bf16.msra.mxu0 0
    %1422 = vmatprep.subr.bf16.mxu0 0
    %1423 = vmatpush1.bf16.msra.mxu0 0
    %1424 = vmatprep.subr.bf16.mxu0 0
    %1425 = vmatpush1.bf16.msra.mxu0 0
    %1426 = vmatprep.subr.bf16.mxu0 0
    %1427 = vmatpush1.bf16.msra.mxu0 0
    %1428 = vmatprep.mubr.bf16.mxu0 0
    %1429 = vmatmul.mubr.bf16.gmra.mrb[0].mxu0 %v1317
    %v1430 = vpop.f32.mrb[0].mxu0
    %v1431 = vadd.f32 %v1346, %v1430
    %v1432 = vpop.f32.mrb[0].mxu0
    %v1433 = vpop.f32.mrb[0].mxu0
    %v1434 = vadd.f32 %v1346, %v1433
    %v1435 = vpop.f32.mrb[0].mxu0
    %1436 = vmatprep.mubr.bf16.mxu0 0
    %1437 = vmatmul.mubr.bf16.gmra.mrb[0].mxu0 %v1318
    %v1438 = vpop.f32.mrb[0].mxu0
    %v1439 = vadd.f32 %v1346, %v1438
    %v1440 = vpop.f32.mrb[0].mxu0
    %v1441 = vpop.f32.mrb[0].mxu0
    %v1442 = vadd.f32 %v1346, %v1441
    %v1443 = vpop.f32.mrb[0].mxu0
    %1444 = vmatprep.mubr.bf16.mxu0 0
    %1445 = vmatmul.mubr.bf16.gmra.mrb[0].mxu0 %v1319
    %v1446 = vpop.f32.mrb[0].mxu0
    %v1447 = vadd.f32 %v1346, %v1446
    %v1448 = vpop.f32.mrb[0].mxu0
    %v1449 = vpop.f32.mrb[0].mxu0
    %v1450 = vadd.f32 %v1346, %v1449
    %v1451 = vpop.f32.mrb[0].mxu0
    %1452 = vmatprep.mubr.bf16.mxu0 0
    %1453 = vmatmul.mubr.bf16.gmra.mrb[0].mxu0 %v1320
    %v1454 = vpop.f32.mrb[0].mxu0
    %v1455 = vadd.f32 %v1346, %v1454
    %v1456 = vpop.f32.mrb[0].mxu0
    %v1457 = vpop.f32.mrb[0].mxu0
    %v1458 = vadd.f32 %v1346, %v1457
    %v1459 = vpop.f32.mrb[0].mxu0
    %1460 = vmatprep.mubr.bf16.mxu0 0
    %1461 = vmatmul.mubr.bf16.gmra.mrb[0].mxu0 %v1321
    %v1462 = vpop.f32.mrb[0].mxu0
    %v1463 = vadd.f32 %v1346, %v1462
    %v1464 = vpop.f32.mrb[0].mxu0
    %v1465 = vpop.f32.mrb[0].mxu0
    %v1466 = vadd.f32 %v1346, %v1465
    %v1467 = vpop.f32.mrb[0].mxu0
    %1468 = vmatprep.mubr.bf16.mxu0 0
    %1469 = vmatmul.mubr.bf16.gmra.mrb[0].mxu0 %v1322
    %v1470 = vpop.f32.mrb[0].mxu0
    %v1471 = vadd.f32 %v1346, %v1470
    %v1472 = vpop.f32.mrb[0].mxu0
    %v1473 = vpop.f32.mrb[0].mxu0
    %v1474 = vadd.f32 %v1346, %v1473
    %v1475 = vpop.f32.mrb[0].mxu0
    %1476 = vmatprep.mubr.bf16.mxu0 0
    %1477 = vmatmul.mubr.bf16.gmra.mrb[0].mxu0 %v1323
    %v1478 = vpop.f32.mrb[0].mxu0
    %v1479 = vadd.f32 %v1346, %v1478
    %v1480 = vpop.f32.mrb[0].mxu0
    %v1481 = vpop.f32.mrb[0].mxu0
    %v1482 = vadd.f32 %v1346, %v1481
    %v1483 = vpop.f32.mrb[0].mxu0
    %1484 = vmatprep.mubr.bf16.mxu0 0
    %1485 = vmatmul.mubr.bf16.gmra.mrb[0].mxu0 %v1324
    %v1486 = vpop.f32.mrb[0].mxu0
    %v1487 = vadd.f32 %v1346, %v1486
    %v1488 = vpop.f32.mrb[0].mxu0
    %v1489 = vpop.f32.mrb[0].mxu0
    %v1490 = vadd.f32 %v1346, %v1489
    %v1491 = vpop.f32.mrb[0].mxu0
    %1492 = vdwg.mxu0
    %v1493 = vmax.f32 %v1431, 0.0
    %v1494 = vmax.f32 %v1434, 0.0
    %v1495 = vmax.f32 %v1439, 0.0
    %v1496 = vmax.f32 %v1442, 0.0
    %v1497 = vmax.f32 %v1447, 0.0
    %v1498 = vmax.f32 %v1450, 0.0
    %v1499 = vmax.f32 %v1455, 0.0
    %v1500 = vmax.f32 %v1458, 0.0
    %v1501 = vmax.f32 %v1463, 0.0
    %v1502 = vmax.f32 %v1466, 0.0
    %v1503 = vmax.f32 %v1471, 0.0
    %v1504 = vmax.f32 %v1474, 0.0
    %v1505 = vmax.f32 %v1479, 0.0
    %v1506 = vmax.f32 %v1482, 0.0
    %v1507 = vmax.f32 %v1487, 0.0
    %v1508 = vmax.f32 %v1490, 0.0
    %v1509 = vpack.c.bf16 %v1494, %v1493
    %v1510 = vpack.c.bf16 %v1496, %v1495
    %v1511 = vpack.c.bf16 %v1498, %v1497
    %v1512 = vpack.c.bf16 %v1500, %v1499
    %v1513 = vpack.c.bf16 %v1502, %v1501
    %v1514 = vpack.c.bf16 %v1504, %v1503
    %v1515 = vpack.c.bf16 %v1506, %v1505
    %v1516 = vpack.c.bf16 %v1508, %v1507
    %v1517 = vld [vmem:[#allocation20] sm:$0xf]
    %v1518 = vld [vmem:[#allocation20 + $0x4] sm:$0xf]
    %v1519 = vld [vmem:[#allocation20 + $0x8] sm:$0xf]
    %v1520 = vld [vmem:[#allocation20 + $0xc] sm:$0xf]
    %v1521 = vld [vmem:[#allocation20 + $0x10] sm:$0xf]
    %v1522 = vld [vmem:[#allocation20 + $0x14] sm:$0xf]
    %v1523 = vld [vmem:[#allocation20 + $0x18] sm:$0xf]
    %v1524 = vld [vmem:[#allocation20 + $0x1c] sm:$0xf]
    %v1525 = vld [vmem:[#allocation20 + $0x20] sm:$0xf]
    %v1526 = vld [vmem:[#allocation20 + $0x24] sm:$0xf]
    %v1527 = vld [vmem:[#allocation20 + $0x28] sm:$0xf]
    %v1528 = vld [vmem:[#allocation20 + $0x2c] sm:$0xf]
    %v1529 = vld [vmem:[#allocation20 + $0x30] sm:$0xf]
    %v1530 = vld [vmem:[#allocation20 + $0x34] sm:$0xf]
    %v1531 = vld [vmem:[#allocation20 + $0x38] sm:$0xf]
    %v1532 = vld [vmem:[#allocation20 + $0x3c] sm:$0xf]
    %v1533 = vld [vmem:[#allocation22] sm:$0x1]
    %v1535 = vlaneseq
    %v1536 = vshrl.u32 %v1535, 7
    %v1537 = vsub.s32 0, %v1536
    %v1538 = vrot.slane %v1533, %v1537
    %v1556 = vunpack.c.l.b16 %v1517
    %v1557 = vunpack.c.l.b16 %v1518
    %v1558 = vunpack.c.l.b16 %v1519
    %v1559 = vunpack.c.l.b16 %v1520
    %v1560 = vunpack.c.l.b16 %v1521
    %v1561 = vunpack.c.l.b16 %v1522
    %v1562 = vunpack.c.l.b16 %v1523
    %v1563 = vunpack.c.l.b16 %v1524
    %v1564 = vunpack.c.l.b16 %v1525
    %v1565 = vunpack.c.l.b16 %v1526
    %v1566 = vunpack.c.l.b16 %v1527
    %v1567 = vunpack.c.l.b16 %v1528
    %v1568 = vunpack.c.l.b16 %v1529
    %v1569 = vunpack.c.l.b16 %v1530
    %v1570 = vunpack.c.l.b16 %v1531
    %v1571 = vunpack.c.l.b16 %v1532
    %v1572 = vpack.c.b16 %v1557, %v1556
    %v1573 = vpack.c.b16 %v1559, %v1558
    %v1574 = vpack.c.b16 %v1561, %v1560
    %v1575 = vpack.c.b16 %v1563, %v1562
    %v1576 = vpack.c.b16 %v1565, %v1564
    %v1577 = vpack.c.b16 %v1567, %v1566
    %v1578 = vpack.c.b16 %v1569, %v1568
    %v1579 = vpack.c.b16 %v1571, %v1570
    %1588 = vmatprep.subr.bf16.mxu0 0
    %1589 = vmatpush1.bf16.msra.mxu0 %v1572
    %1590 = vmatprep.subr.bf16.mxu0 0
    %1591 = vmatpush1.bf16.msra.mxu0 %v1573
    %1592 = vmatprep.subr.bf16.mxu0 0
    %1593 = vmatpush1.bf16.msra.mxu0 %v1574
    %1594 = vmatprep.subr.bf16.mxu0 0
    %1595 = vmatpush1.bf16.msra.mxu0 %v1575
    %1596 = vmatprep.subr.bf16.mxu0 0
    %1597 = vmatpush1.bf16.msra.mxu0 %v1576
    %1598 = vmatprep.subr.bf16.mxu0 0
    %1599 = vmatpush1.bf16.msra.mxu0 %v1577
    %1600 = vmatprep.subr.bf16.mxu0 0
    %1601 = vmatpush1.bf16.msra.mxu0 %v1578
    %1602 = vmatprep.subr.bf16.mxu0 0
    %1603 = vmatpush1.bf16.msra.mxu0 %v1579
    %1604 = vmatprep.subr.bf16.mxu0 0
    %1605 = vmatpush1.bf16.msra.mxu0 0
    %1606 = vmatprep.subr.bf16.mxu0 0
    %1607 = vmatpush1.bf16.msra.mxu0 0
    %1608 = vmatprep.subr.bf16.mxu0 0
    %1609 = vmatpush1.bf16.msra.mxu0 0
    %1610 = vmatprep.subr.bf16.mxu0 0
    %1611 = vmatpush1.bf16.msra.mxu0 0
    %1612 = vmatprep.subr.bf16.mxu0 0
    %1613 = vmatpush1.bf16.msra.mxu0 0
    %1614 = vmatprep.subr.bf16.mxu0 0
    %1615 = vmatpush1.bf16.msra.mxu0 0
    %1616 = vmatprep.subr.bf16.mxu0 0
    %1617 = vmatpush1.bf16.msra.mxu0 0
    %1618 = vmatprep.subr.bf16.mxu0 0
    %1619 = vmatpush1.bf16.msra.mxu0 0
    %1620 = vmatprep.mubr.bf16.mxu0 0
    %1621 = vmatmul.mubr.bf16.gmra.mrb[0].mxu0 %v1509
    %v1622 = vpop.f32.mrb[0].mxu0
    %v1623 = vadd.f32 %v1538, %v1622
    %v1624 = vpop.f32.mrb[0].mxu0
    %v1625 = vpop.f32.mrb[0].mxu0
    %v1626 = vadd.f32 %v1538, %v1625
    %v1627 = vpop.f32.mrb[0].mxu0
    %1628 = vmatprep.mubr.bf16.mxu0 0
    %1629 = vmatmul.mubr.bf16.gmra.mrb[0].mxu0 %v1510
    %v1630 = vpop.f32.mrb[0].mxu0
    %v1631 = vadd.f32 %v1538, %v1630
    %v1632 = vpop.f32.mrb[0].mxu0
    %v1633 = vpop.f32.mrb[0].mxu0
    %v1634 = vadd.f32 %v1538, %v1633
    %v1635 = vpop.f32.mrb[0].mxu0
    %1636 = vmatprep.mubr.bf16.mxu0 0
    %1637 = vmatmul.mubr.bf16.gmra.mrb[0].mxu0 %v1511
    %v1638 = vpop.f32.mrb[0].mxu0
    %v1639 = vadd.f32 %v1538, %v1638
    %v1640 = vpop.f32.mrb[0].mxu0
    %v1641 = vpop.f32.mrb[0].mxu0
    %v1642 = vadd.f32 %v1538, %v1641
    %v1643 = vpop.f32.mrb[0].mxu0
    %1644 = vmatprep.mubr.bf16.mxu0 0
    %1645 = vmatmul.mubr.bf16.gmra.mrb[0].mxu0 %v1512
    %v1646 = vpop.f32.mrb[0].mxu0
    %v1647 = vadd.f32 %v1538, %v1646
    %v1648 = vpop.f32.mrb[0].mxu0
    %v1649 = vpop.f32.mrb[0].mxu0
    %v1650 = vadd.f32 %v1538, %v1649
    %v1651 = vpop.f32.mrb[0].mxu0
    %1652 = vmatprep.mubr.bf16.mxu0 0
    %1653 = vmatmul.mubr.bf16.gmra.mrb[0].mxu0 %v1513
    %v1654 = vpop.f32.mrb[0].mxu0
    %v1655 = vadd.f32 %v1538, %v1654
    %v1656 = vpop.f32.mrb[0].mxu0
    %v1657 = vpop.f32.mrb[0].mxu0
    %v1658 = vadd.f32 %v1538, %v1657
    %v1659 = vpop.f32.mrb[0].mxu0
    %1660 = vmatprep.mubr.bf16.mxu0 0
    %1661 = vmatmul.mubr.bf16.gmra.mrb[0].mxu0 %v1514
    %v1662 = vpop.f32.mrb[0].mxu0
    %v1663 = vadd.f32 %v1538, %v1662
    %v1664 = vpop.f32.mrb[0].mxu0
    %v1665 = vpop.f32.mrb[0].mxu0
    %v1666 = vadd.f32 %v1538, %v1665
    %v1667 = vpop.f32.mrb[0].mxu0
    %1668 = vmatprep.mubr.bf16.mxu0 0
    %1669 = vmatmul.mubr.bf16.gmra.mrb[0].mxu0 %v1515
    %v1670 = vpop.f32.mrb[0].mxu0
    %v1671 = vadd.f32 %v1538, %v1670
    %v1672 = vpop.f32.mrb[0].mxu0
    %v1673 = vpop.f32.mrb[0].mxu0
    %v1674 = vadd.f32 %v1538, %v1673
    %v1675 = vpop.f32.mrb[0].mxu0
    %1676 = vmatprep.mubr.bf16.mxu0 0
    %1677 = vmatmul.mubr.bf16.gmra.mrb[0].mxu0 %v1516
    %v1678 = vpop.f32.mrb[0].mxu0
    %v1679 = vadd.f32 %v1538, %v1678
    %v1680 = vpop.f32.mrb[0].mxu0
    %v1681 = vpop.f32.mrb[0].mxu0
    %v1682 = vadd.f32 %v1538, %v1681
    %v1683 = vpop.f32.mrb[0].mxu0
    %1684 = vdwg.mxu0
    %v1685 = vmax.f32 %v1623, 0.0
    %v1686 = vmax.f32 %v1626, 0.0
    %v1687 = vmax.f32 %v1631, 0.0
    %v1688 = vmax.f32 %v1634, 0.0
    %v1689 = vmax.f32 %v1639, 0.0
    %v1690 = vmax.f32 %v1642, 0.0
    %v1691 = vmax.f32 %v1647, 0.0
    %v1692 = vmax.f32 %v1650, 0.0
    %v1693 = vmax.f32 %v1655, 0.0
    %v1694 = vmax.f32 %v1658, 0.0
    %v1695 = vmax.f32 %v1663, 0.0
    %v1696 = vmax.f32 %v1666, 0.0
    %v1697 = vmax.f32 %v1671, 0.0
    %v1698 = vmax.f32 %v1674, 0.0
    %v1699 = vmax.f32 %v1679, 0.0
    %v1700 = vmax.f32 %v1682, 0.0
    %1701 = vmatprep.subr.mxu0 0.0
    %1702 = vmatpush1.msra.mxu0 %v1685
    %1703 = vmatprep.subr.mxu0 0.0
    %1704 = vmatpush1.msra.mxu0 %v1686
    %1705 = vmatprep.subr.mxu0 0.0
    %1706 = vmatpush1.msra.mxu0 %v1687
    %1707 = vmatprep.subr.mxu0 0.0
    %1708 = vmatpush1.msra.mxu0 %v1688
    %1709 = vmatprep.subr.mxu0 0.0
    %1710 = vmatpush1.msra.mxu0 %v1689
    %1711 = vmatprep.subr.mxu0 0.0
    %1712 = vmatpush1.msra.mxu0 %v1690
    %1713 = vmatprep.subr.mxu0 0.0
    %1714 = vmatpush1.msra.mxu0 %v1691
    %1715 = vmatprep.subr.mxu0 0.0
    %1716 = vmatpush1.msra.mxu0 %v1692
    %1717 = vmatprep.subr.mxu0 0.0
    %1718 = vmatpush1.msra.mxu0 %v1693
    %1719 = vmatprep.subr.mxu0 0.0
    %1720 = vmatpush1.msra.mxu0 %v1694
    %1721 = vmatprep.subr.mxu0 0.0
    %1722 = vmatpush1.msra.mxu0 %v1695
    %1723 = vmatprep.subr.mxu0 0.0
    %1724 = vmatpush1.msra.mxu0 %v1696
    %1725 = vmatprep.subr.mxu0 0.0
    %1726 = vmatpush1.msra.mxu0 %v1697
    %1727 = vmatprep.subr.mxu0 0.0
    %1728 = vmatpush1.msra.mxu0 %v1698
    %1729 = vmatprep.subr.mxu0 0.0
    %1730 = vmatpush1.msra.mxu0 %v1699
    %1731 = vmatprep.subr.mxu0 0.0
    %1732 = vmatpush1.msra.mxu0 %v1700
    %1733 = vmatprep.subr.mxu0 0.0
    %1734 = vmatpush1.msra.mxu0 0.0
    %1735 = vmatprep.subr.mxu0 0.0
    %1736 = vmatpush1.msra.mxu0 0.0
    %1737 = vmatprep.subr.mxu0 0.0
    %1738 = vmatpush1.msra.mxu0 0.0
    %1739 = vmatprep.subr.mxu0 0.0
    %1740 = vmatpush1.msra.mxu0 0.0
    %1741 = vmatprep.subr.mxu0 0.0
    %1742 = vmatpush1.msra.mxu0 0.0
    %1743 = vmatprep.subr.mxu0 0.0
    %1744 = vmatpush1.msra.mxu0 0.0
    %1745 = vmatprep.subr.mxu0 0.0
    %1746 = vmatpush1.msra.mxu0 0.0
    %1747 = vmatprep.subr.mxu0 0.0
    %1748 = vmatpush1.msra.mxu0 0.0
    %1749 = vmatprep.subr.mxu0 0.0
    %1750 = vmatpush1.msra.mxu0 0.0
    %1751 = vmatprep.subr.mxu0 0.0
    %1752 = vmatpush1.msra.mxu0 0.0
    %1753 = vmatprep.subr.mxu0 0.0
    %1754 = vmatpush1.msra.mxu0 0.0
    %1755 = vmatprep.subr.mxu0 0.0
    %1756 = vmatpush1.msra.mxu0 0.0
    %1757 = vmatprep.subr.mxu0 0.0
    %1758 = vmatpush1.msra.mxu0 0.0
    %1759 = vmatprep.subr.mxu0 0.0
    %1760 = vmatpush1.msra.mxu0 0.0
    %1761 = vmatprep.subr.mxu0 0.0
    %1762 = vmatpush1.msra.mxu0 0.0
    %1763 = vmatprep.subr.mxu0 0.0
    %1764 = vmatpush1.msra.mxu0 0.0
    %1765 = vmatprep.mubr.f32.mxu0 0.0
    %1766 = vmatmul.mubr.f32.gmra.mrb[0].mxu0 %v315
    %v1767 = vpop.f32.mrb[0].mxu0
    %v1768 = vadd.f32 0.0, %v1767
    %v1769 = vpop.f32.mrb[0].mxu0
    %1770 = vdwg.mxu0
    %v1771 = vmul.f32 %v1685, %v1685
    %v1772 = vmul.f32 %v1686, %v1686
    %v1773 = vmul.f32 %v1687, %v1687
    %v1774 = vmul.f32 %v1688, %v1688
    %v1775 = vmul.f32 %v1689, %v1689
    %v1776 = vmul.f32 %v1690, %v1690
    %v1777 = vmul.f32 %v1691, %v1691
    %v1778 = vmul.f32 %v1692, %v1692
    %v1779 = vmul.f32 %v1693, %v1693
    %v1780 = vmul.f32 %v1694, %v1694
    %v1781 = vmul.f32 %v1695, %v1695
    %v1782 = vmul.f32 %v1696, %v1696
    %v1783 = vmul.f32 %v1697, %v1697
    %v1784 = vmul.f32 %v1698, %v1698
    %v1785 = vmul.f32 %v1699, %v1699
    %v1786 = vmul.f32 %v1700, %v1700
    %1787 = vmatprep.subr.mxu0 0.0
    %1788 = vmatpush1.msra.mxu0 %v1771
    %1789 = vmatprep.subr.mxu0 0.0
    %1790 = vmatpush1.msra.mxu0 %v1772
    %1791 = vmatprep.subr.mxu0 0.0
    %1792 = vmatpush1.msra.mxu0 %v1773
    %1793 = vmatprep.subr.mxu0 0.0
    %1794 = vmatpush1.msra.mxu0 %v1774
    %1795 = vmatprep.subr.mxu0 0.0
    %1796 = vmatpush1.msra.mxu0 %v1775
    %1797 = vmatprep.subr.mxu0 0.0
    %1798 = vmatpush1.msra.mxu0 %v1776
    %1799 = vmatprep.subr.mxu0 0.0
    %1800 = vmatpush1.msra.mxu0 %v1777
    %1801 = vmatprep.subr.mxu0 0.0
    %1802 = vmatpush1.msra.mxu0 %v1778
    %1803 = vmatprep.subr.mxu0 0.0
    %1804 = vmatpush1.msra.mxu0 %v1779
    %1805 = vmatprep.subr.mxu0 0.0
    %1806 = vmatpush1.msra.mxu0 %v1780
    %1807 = vmatprep.subr.mxu0 0.0
    %1808 = vmatpush1.msra.mxu0 %v1781
    %1809 = vmatprep.subr.mxu0 0.0
    %1810 = vmatpush1.msra.mxu0 %v1782
    %1811 = vmatprep.subr.mxu0 0.0
    %1812 = vmatpush1.msra.mxu0 %v1783
    %1813 = vmatprep.subr.mxu0 0.0
    %1814 = vmatpush1.msra.mxu0 %v1784
    %1815 = vmatprep.subr.mxu0 0.0
    %1816 = vmatpush1.msra.mxu0 %v1785
    %1817 = vmatprep.subr.mxu0 0.0
    %1818 = vmatpush1.msra.mxu0 %v1786
    %1819 = vmatprep.subr.mxu0 0.0
    %1820 = vmatpush1.msra.mxu0 0.0
    %1821 = vmatprep.subr.mxu0 0.0
    %1822 = vmatpush1.msra.mxu0 0.0
    %1823 = vmatprep.subr.mxu0 0.0
    %1824 = vmatpush1.msra.mxu0 0.0
    %1825 = vmatprep.subr.mxu0 0.0
    %1826 = vmatpush1.msra.mxu0 0.0
    %1827 = vmatprep.subr.mxu0 0.0
    %1828 = vmatpush1.msra.mxu0 0.0
    %1829 = vmatprep.subr.mxu0 0.0
    %1830 = vmatpush1.msra.mxu0 0.0
    %1831 = vmatprep.subr.mxu0 0.0
    %1832 = vmatpush1.msra.mxu0 0.0
    %1833 = vmatprep.subr.mxu0 0.0
    %1834 = vmatpush1.msra.mxu0 0.0
    %1835 = vmatprep.subr.mxu0 0.0
    %1836 = vmatpush1.msra.mxu0 0.0
    %1837 = vmatprep.subr.mxu0 0.0
    %1838 = vmatpush1.msra.mxu0 0.0
    %1839 = vmatprep.subr.mxu0 0.0
    %1840 = vmatpush1.msra.mxu0 0.0
    %1841 = vmatprep.subr.mxu0 0.0
    %1842 = vmatpush1.msra.mxu0 0.0
    %1843 = vmatprep.subr.mxu0 0.0
    %1844 = vmatpush1.msra.mxu0 0.0
    %1845 = vmatprep.subr.mxu0 0.0
    %1846 = vmatpush1.msra.mxu0 0.0
    %1847 = vmatprep.subr.mxu0 0.0
    %1848 = vmatpush1.msra.mxu0 0.0
    %1849 = vmatprep.subr.mxu0 0.0
    %1850 = vmatpush1.msra.mxu0 0.0
    %1851 = vmatprep.mubr.f32.mxu0 0.0
    %1852 = vmatmul.mubr.f32.gmra.mrb[0].mxu0 %v315
    %v1853 = vpop.f32.mrb[0].mxu0
    %v1854 = vadd.f32 0.0, %v1853
    %v1855 = vpop.f32.mrb[0].mxu0
    %1856 = vdwg.mxu0
    %v1857 = vmul.f32 %v1768, %v1768
    %v1858 = vsub.f32 %v1854, %v1857
    %v1859 = vmax.f32 %v1858, 0.0
    %v1860 = vlaneseq
    %v1861 = vshrl.u32 %v1860, 7
    %v1862 = vsub.s32 0, %v1861
    %v1863 = vrot.slane %v1768, %v1862
    %v1864 = vsub.f32 %v1685, %v1863
    %v1865 = vsub.f32 %v1686, %v1863
    %v1866 = vsub.f32 %v1687, %v1863
    %v1867 = vsub.f32 %v1688, %v1863
    %v1868 = vsub.f32 %v1689, %v1863
    %v1869 = vsub.f32 %v1690, %v1863
    %v1870 = vsub.f32 %v1691, %v1863
    %v1871 = vsub.f32 %v1692, %v1863
    %v1872 = vsub.f32 %v1693, %v1863
    %v1873 = vsub.f32 %v1694, %v1863
    %v1874 = vsub.f32 %v1695, %v1863
    %v1875 = vsub.f32 %v1696, %v1863
    %v1876 = vsub.f32 %v1697, %v1863
    %v1877 = vsub.f32 %v1698, %v1863
    %v1878 = vsub.f32 %v1699, %v1863
    %v1879 = vsub.f32 %v1700, %v1863
    %v1880 = vadd.f32 %v1859, 1e-05
    %v1881 = vrsqrt.pop %v1880
    %v1882 = vlaneseq
    %v1883 = vshrl.u32 %v1882, 7
    %v1884 = vsub.s32 0, %v1883
    %v1885 = vrot.slane %v1881, %v1884
    %v1886 = vmul.f32 %v1864, %v1885
    %v1887 = vmul.f32 %v1865, %v1885
    %v1888 = vmul.f32 %v1866, %v1885
    %v1889 = vmul.f32 %v1867, %v1885
    %v1890 = vmul.f32 %v1868, %v1885
    %v1891 = vmul.f32 %v1869, %v1885
    %v1892 = vmul.f32 %v1870, %v1885
    %v1893 = vmul.f32 %v1871, %v1885
    %v1894 = vmul.f32 %v1872, %v1885
    %v1895 = vmul.f32 %v1873, %v1885
    %v1896 = vmul.f32 %v1874, %v1885
    %v1897 = vmul.f32 %v1875, %v1885
    %v1898 = vmul.f32 %v1876, %v1885
    %v1899 = vmul.f32 %v1877, %v1885
    %v1900 = vmul.f32 %v1878, %v1885
    %v1901 = vmul.f32 %v1879, %v1885
    %v1902 = vld [vmem:[#allocation23] sm:$0x1]
    %v1904 = vlaneseq
    %v1905 = vshrl.u32 %v1904, 7
    %v1906 = vsub.s32 0, %v1905
    %v1907 = vrot.slane %v1902, %v1906
    %v1909 = vmul.f32 %v1886, %v1907
    %v1910 = vmul.f32 %v1887, %v1907
    %v1911 = vmul.f32 %v1888, %v1907
    %v1912 = vmul.f32 %v1889, %v1907
    %v1913 = vmul.f32 %v1890, %v1907
    %v1914 = vmul.f32 %v1891, %v1907
    %v1915 = vmul.f32 %v1892, %v1907
    %v1916 = vmul.f32 %v1893, %v1907
    %v1917 = vmul.f32 %v1894, %v1907
    %v1918 = vmul.f32 %v1895, %v1907
    %v1919 = vmul.f32 %v1896, %v1907
    %v1920 = vmul.f32 %v1897, %v1907
    %v1921 = vmul.f32 %v1898, %v1907
    %v1922 = vmul.f32 %v1899, %v1907
    %v1923 = vmul.f32 %v1900, %v1907
    %v1924 = vmul.f32 %v1901, %v1907
    %v1925 = vld [vmem:[#allocation25] sm:$0x1]
    %v1927 = vlaneseq
    %v1928 = vshrl.u32 %v1927, 7
    %v1929 = vsub.s32 0, %v1928
    %v1930 = vrot.slane %v1925, %v1929
    %v1932 = vadd.f32 %v1909, %v1930
    %v1933 = vadd.f32 %v1910, %v1930
    %v1934 = vadd.f32 %v1911, %v1930
    %v1935 = vadd.f32 %v1912, %v1930
    %v1936 = vadd.f32 %v1913, %v1930
    %v1937 = vadd.f32 %v1914, %v1930
    %v1938 = vadd.f32 %v1915, %v1930
    %v1939 = vadd.f32 %v1916, %v1930
    %v1940 = vadd.f32 %v1917, %v1930
    %v1941 = vadd.f32 %v1918, %v1930
    %v1942 = vadd.f32 %v1919, %v1930
    %v1943 = vadd.f32 %v1920, %v1930
    %v1944 = vadd.f32 %v1921, %v1930
    %v1945 = vadd.f32 %v1922, %v1930
    %v1946 = vadd.f32 %v1923, %v1930
    %v1947 = vadd.f32 %v1924, %v1930
    %1948 = vmatprep.subr.mxu0 0.0
    %1949 = vmatpush1.msra.mxu0 %v1932
    %1950 = vmatprep.subr.mxu0 0.0
    %1951 = vmatpush1.msra.mxu0 %v1933
    %1952 = vmatprep.subr.mxu0 0.0
    %1953 = vmatpush1.msra.mxu0 %v1934
    %1954 = vmatprep.subr.mxu0 0.0
    %1955 = vmatpush1.msra.mxu0 %v1935
    %1956 = vmatprep.subr.mxu0 0.0
    %1957 = vmatpush1.msra.mxu0 %v1936
    %1958 = vmatprep.subr.mxu0 0.0
    %1959 = vmatpush1.msra.mxu0 %v1937
    %1960 = vmatprep.subr.mxu0 0.0
    %1961 = vmatpush1.msra.mxu0 %v1938
    %1962 = vmatprep.subr.mxu0 0.0
    %1963 = vmatpush1.msra.mxu0 %v1939
    %1964 = vmatprep.subr.mxu0 0.0
    %1965 = vmatpush1.msra.mxu0 %v1940
    %1966 = vmatprep.subr.mxu0 0.0
    %1967 = vmatpush1.msra.mxu0 %v1941
    %1968 = vmatprep.subr.mxu0 0.0
    %1969 = vmatpush1.msra.mxu0 %v1942
    %1970 = vmatprep.subr.mxu0 0.0
    %1971 = vmatpush1.msra.mxu0 %v1943
    %1972 = vmatprep.subr.mxu0 0.0
    %1973 = vmatpush1.msra.mxu0 %v1944
    %1974 = vmatprep.subr.mxu0 0.0
    %1975 = vmatpush1.msra.mxu0 %v1945
    %1976 = vmatprep.subr.mxu0 0.0
    %1977 = vmatpush1.msra.mxu0 %v1946
    %1978 = vmatprep.subr.mxu0 0.0
    %1979 = vmatpush1.msra.mxu0 %v1947
    %1980 = vmatprep.subr.mxu0 0.0
    %1981 = vmatpush1.msra.mxu0 0.0
    %1982 = vmatprep.subr.mxu0 0.0
    %1983 = vmatpush1.msra.mxu0 0.0
    %1984 = vmatprep.subr.mxu0 0.0
    %1985 = vmatpush1.msra.mxu0 0.0
    %1986 = vmatprep.subr.mxu0 0.0
    %1987 = vmatpush1.msra.mxu0 0.0
    %1988 = vmatprep.subr.mxu0 0.0
    %1989 = vmatpush1.msra.mxu0 0.0
    %1990 = vmatprep.subr.mxu0 0.0
    %1991 = vmatpush1.msra.mxu0 0.0
    %1992 = vmatprep.subr.mxu0 0.0
    %1993 = vmatpush1.msra.mxu0 0.0
    %1994 = vmatprep.subr.mxu0 0.0
    %1995 = vmatpush1.msra.mxu0 0.0
    %1996 = vmatprep.subr.mxu0 0.0
    %1997 = vmatpush1.msra.mxu0 0.0
    %1998 = vmatprep.subr.mxu0 0.0
    %1999 = vmatpush1.msra.mxu0 0.0
    %2000 = vmatprep.subr.mxu0 0.0
    %2001 = vmatpush1.msra.mxu0 0.0
    %2002 = vmatprep.subr.mxu0 0.0
    %2003 = vmatpush1.msra.mxu0 0.0
    %2004 = vmatprep.subr.mxu0 0.0
    %2005 = vmatpush1.msra.mxu0 0.0
    %2006 = vmatprep.subr.mxu0 0.0
    %2007 = vmatpush1.msra.mxu0 0.0
    %2008 = vmatprep.subr.mxu0 0.0
    %2009 = vmatpush1.msra.mxu0 0.0
    %2010 = vmatprep.subr.mxu0 0.0
    %2011 = vmatpush1.msra.mxu0 0.0
    %2012 = vmatprep.mubr.f32.mxu0 0.0
    %2013 = vmatmul.mubr.f32.gmra.mrb[0].mxu0 %v316
    %v2014 = vpop.f32.mrb[0].mxu0
    %v2015 = vadd.f32 0.0, %v2014
    %v2016 = vpop.f32.mrb[0].mxu0
    %2017 = vdwg.mxu0
    %2018 = vst [vmem:[#allocation29 + $0x4] sm:$0xf] %v2015
    %v2019 = vpack.c.bf16 %v1933, %v1932
    %v2020 = vpack.c.bf16 %v1935, %v1934
    %v2021 = vpack.c.bf16 %v1937, %v1936
    %v2022 = vpack.c.bf16 %v1939, %v1938
    %v2023 = vpack.c.bf16 %v1941, %v1940
    %v2024 = vpack.c.bf16 %v1943, %v1942
    %v2025 = vpack.c.bf16 %v1945, %v1944
    %v2026 = vpack.c.bf16 %v1947, %v1946
    %2027 = vmatprep.subr.bf16.mxu0 0
    %2028 = vmatpush1.bf16.msra.mxu0 %v2019
    %2029 = vmatprep.subr.bf16.mxu0 0
    %2030 = vmatpush1.bf16.msra.mxu0 %v2020
    %2031 = vmatprep.subr.bf16.mxu0 0
    %2032 = vmatpush1.bf16.msra.mxu0 %v2021
    %2033 = vmatprep.subr.bf16.mxu0 0
    %2034 = vmatpush1.bf16.msra.mxu0 %v2022
    %2035 = vmatprep.subr.bf16.mxu0 0
    %2036 = vmatpush1.bf16.msra.mxu0 %v2023
    %2037 = vmatprep.subr.bf16.mxu0 0
    %2038 = vmatpush1.bf16.msra.mxu0 %v2024
    %2039 = vmatprep.subr.bf16.mxu0 0
    %2040 = vmatpush1.bf16.msra.mxu0 %v2025
    %2041 = vmatprep.subr.bf16.mxu0 0
    %2042 = vmatpush1.bf16.msra.mxu0 %v2026
    %2043 = vmatprep.subr.bf16.mxu0 0
    %2044 = vmatpush1.bf16.msra.mxu0 0
    %2045 = vmatprep.subr.bf16.mxu0 0
    %2046 = vmatpush1.bf16.msra.mxu0 0
    %2047 = vmatprep.subr.bf16.mxu0 0
    %2048 = vmatpush1.bf16.msra.mxu0 0
    %2049 = vmatprep.subr.bf16.mxu0 0
    %2050 = vmatpush1.bf16.msra.mxu0 0
    %2051 = vmatprep.subr.bf16.mxu0 0
    %2052 = vmatpush1.bf16.msra.mxu0 0
    %2053 = vmatprep.subr.bf16.mxu0 0
    %2054 = vmatpush1.bf16.msra.mxu0 0
    %2055 = vmatprep.subr.bf16.mxu0 0
    %2056 = vmatpush1.bf16.msra.mxu0 0
    %2057 = vmatprep.subr.bf16.mxu0 0
    %2058 = vmatpush1.bf16.msra.mxu0 0
    %2059 = vmatprep.mubr.bf16.mxu0 0
    %2060 = vmatmul.mubr.bf16.gmra.mrb[0].mxu0 %v349
    %v2061 = vpop.f32.mrb[0].mxu0
    %v2062 = vadd.f32 0.0, %v2061
    %v2063 = vpop.f32.mrb[0].mxu0
    %v2064 = vpop.f32.mrb[0].mxu0
    %v2065 = vadd.f32 0.0, %v2064
    %v2066 = vpop.f32.mrb[0].mxu0
    %2067 = vmatprep.mubr.bf16.mxu0 0
    %2068 = vmatmul.mubr.bf16.gmra.mrb[0].mxu0 %v350
    %v2069 = vpop.f32.mrb[0].mxu0
    %v2070 = vadd.f32 0.0, %v2069
    %v2071 = vpop.f32.mrb[0].mxu0
    %v2072 = vpop.f32.mrb[0].mxu0
    %v2073 = vadd.f32 0.0, %v2072
    %v2074 = vpop.f32.mrb[0].mxu0
    %2075 = vmatprep.mubr.bf16.mxu0 0
    %2076 = vmatmul.mubr.bf16.gmra.mrb[0].mxu0 %v351
    %v2077 = vpop.f32.mrb[0].mxu0
    %v2078 = vadd.f32 0.0, %v2077
    %v2079 = vpop.f32.mrb[0].mxu0
    %v2080 = vpop.f32.mrb[0].mxu0
    %v2081 = vadd.f32 0.0, %v2080
    %v2082 = vpop.f32.mrb[0].mxu0
    %2083 = vmatprep.mubr.bf16.mxu0 0
    %2084 = vmatmul.mubr.bf16.gmra.mrb[0].mxu0 %v352
    %v2085 = vpop.f32.mrb[0].mxu0
    %v2086 = vadd.f32 0.0, %v2085
    %v2087 = vpop.f32.mrb[0].mxu0
    %v2088 = vpop.f32.mrb[0].mxu0
    %v2089 = vadd.f32 0.0, %v2088
    %v2090 = vpop.f32.mrb[0].mxu0
    %2091 = vmatprep.mubr.bf16.mxu0 0
    %2092 = vmatmul.mubr.bf16.gmra.mrb[0].mxu0 %v353
    %v2093 = vpop.f32.mrb[0].mxu0
    %v2094 = vadd.f32 0.0, %v2093
    %v2095 = vpop.f32.mrb[0].mxu0
    %v2096 = vpop.f32.mrb[0].mxu0
    %v2097 = vadd.f32 0.0, %v2096
    %v2098 = vpop.f32.mrb[0].mxu0
    %2099 = vmatprep.mubr.bf16.mxu0 0
    %2100 = vmatmul.mubr.bf16.gmra.mrb[0].mxu0 %v354
    %v2101 = vpop.f32.mrb[0].mxu0
    %v2102 = vadd.f32 0.0, %v2101
    %v2103 = vpop.f32.mrb[0].mxu0
    %v2104 = vpop.f32.mrb[0].mxu0
    %v2105 = vadd.f32 0.0, %v2104
    %v2106 = vpop.f32.mrb[0].mxu0
    %2107 = vmatprep.mubr.bf16.mxu0 0
    %2108 = vmatmul.mubr.bf16.gmra.mrb[0].mxu0 %v355
    %v2109 = vpop.f32.mrb[0].mxu0
    %v2110 = vadd.f32 0.0, %v2109
    %v2111 = vpop.f32.mrb[0].mxu0
    %v2112 = vpop.f32.mrb[0].mxu0
    %v2113 = vadd.f32 0.0, %v2112
    %v2114 = vpop.f32.mrb[0].mxu0
    %2115 = vmatprep.mubr.bf16.mxu0 0
    %2116 = vmatmul.mubr.bf16.gmra.mrb[0].mxu0 %v356
    %v2117 = vpop.f32.mrb[0].mxu0
    %v2118 = vadd.f32 0.0, %v2117
    %v2119 = vpop.f32.mrb[0].mxu0
    %v2120 = vpop.f32.mrb[0].mxu0
    %v2121 = vadd.f32 0.0, %v2120
    %v2122 = vpop.f32.mrb[0].mxu0
    %2123 = vdwg.mxu0
    %v2124 = vpack.c.bf16 %v2065, %v2062
    %v2125 = vpack.c.bf16 %v2073, %v2070
    %v2126 = vpack.c.bf16 %v2081, %v2078
    %v2127 = vpack.c.bf16 %v2089, %v2086
    %v2128 = vpack.c.bf16 %v2097, %v2094
    %v2129 = vpack.c.bf16 %v2105, %v2102
    %v2130 = vpack.c.bf16 %v2113, %v2110
    %v2131 = vpack.c.bf16 %v2121, %v2118
    %v2132 = vld [vmem:[#allocation26] sm:$0xf]
    %v2133 = vld [vmem:[#allocation26 + $0x4] sm:$0xf]
    %v2134 = vld [vmem:[#allocation26 + $0x8] sm:$0xf]
    %v2135 = vld [vmem:[#allocation26 + $0xc] sm:$0xf]
    %v2136 = vld [vmem:[#allocation26 + $0x10] sm:$0xf]
    %v2137 = vld [vmem:[#allocation26 + $0x14] sm:$0xf]
    %v2138 = vld [vmem:[#allocation26 + $0x18] sm:$0xf]
    %v2139 = vld [vmem:[#allocation26 + $0x1c] sm:$0xf]
    %v2140 = vld [vmem:[#allocation26 + $0x20] sm:$0xf]
    %v2141 = vld [vmem:[#allocation26 + $0x24] sm:$0xf]
    %v2142 = vld [vmem:[#allocation26 + $0x28] sm:$0xf]
    %v2143 = vld [vmem:[#allocation26 + $0x2c] sm:$0xf]
    %v2144 = vld [vmem:[#allocation26 + $0x30] sm:$0xf]
    %v2145 = vld [vmem:[#allocation26 + $0x34] sm:$0xf]
    %v2146 = vld [vmem:[#allocation26 + $0x38] sm:$0xf]
    %v2147 = vld [vmem:[#allocation26 + $0x3c] sm:$0xf]
    %v2148 = vld [vmem:[#allocation28] sm:$0x1]
    %v2150 = vlaneseq
    %v2151 = vshrl.u32 %v2150, 7
    %v2152 = vsub.s32 0, %v2151
    %v2153 = vrot.slane %v2148, %v2152
    %v2171 = vunpack.c.l.b16 %v2132
    %v2172 = vunpack.c.l.b16 %v2133
    %v2173 = vunpack.c.l.b16 %v2134
    %v2174 = vunpack.c.l.b16 %v2135
    %v2175 = vunpack.c.l.b16 %v2136
    %v2176 = vunpack.c.l.b16 %v2137
    %v2177 = vunpack.c.l.b16 %v2138
    %v2178 = vunpack.c.l.b16 %v2139
    %v2179 = vunpack.c.l.b16 %v2140
    %v2180 = vunpack.c.l.b16 %v2141
    %v2181 = vunpack.c.l.b16 %v2142
    %v2182 = vunpack.c.l.b16 %v2143
    %v2183 = vunpack.c.l.b16 %v2144
    %v2184 = vunpack.c.l.b16 %v2145
    %v2185 = vunpack.c.l.b16 %v2146
    %v2186 = vunpack.c.l.b16 %v2147
    %v2187 = vpack.c.b16 %v2172, %v2171
    %v2188 = vpack.c.b16 %v2174, %v2173
    %v2189 = vpack.c.b16 %v2176, %v2175
    %v2190 = vpack.c.b16 %v2178, %v2177
    %v2191 = vpack.c.b16 %v2180, %v2179
    %v2192 = vpack.c.b16 %v2182, %v2181
    %v2193 = vpack.c.b16 %v2184, %v2183
    %v2194 = vpack.c.b16 %v2186, %v2185
    %2203 = vmatprep.subr.bf16.mxu0 0
    %2204 = vmatpush1.bf16.msra.mxu0 %v2187
    %2205 = vmatprep.subr.bf16.mxu0 0
    %2206 = vmatpush1.bf16.msra.mxu0 %v2188
    %2207 = vmatprep.subr.bf16.mxu0 0
    %2208 = vmatpush1.bf16.msra.mxu0 %v2189
    %2209 = vmatprep.subr.bf16.mxu0 0
    %2210 = vmatpush1.bf16.msra.mxu0 %v2190
    %2211 = vmatprep.subr.bf16.mxu0 0
    %2212 = vmatpush1.bf16.msra.mxu0 %v2191
    %2213 = vmatprep.subr.bf16.mxu0 0
    %2214 = vmatpush1.bf16.msra.mxu0 %v2192
    %2215 = vmatprep.subr.bf16.mxu0 0
    %2216 = vmatpush1.bf16.msra.mxu0 %v2193
    %2217 = vmatprep.subr.bf16.mxu0 0
    %2218 = vmatpush1.bf16.msra.mxu0 %v2194
    %2219 = vmatprep.subr.bf16.mxu0 0
    %2220 = vmatpush1.bf16.msra.mxu0 0
    %2221 = vmatprep.subr.bf16.mxu0 0
    %2222 = vmatpush1.bf16.msra.mxu0 0
    %2223 = vmatprep.subr.bf16.mxu0 0
    %2224 = vmatpush1.bf16.msra.mxu0 0
    %2225 = vmatprep.subr.bf16.mxu0 0
    %2226 = vmatpush1.bf16.msra.mxu0 0
    %2227 = vmatprep.subr.bf16.mxu0 0
    %2228 = vmatpush1.bf16.msra.mxu0 0
    %2229 = vmatprep.subr.bf16.mxu0 0
    %2230 = vmatpush1.bf16.msra.mxu0 0
    %2231 = vmatprep.subr.bf16.mxu0 0
    %2232 = vmatpush1.bf16.msra.mxu0 0
    %2233 = vmatprep.subr.bf16.mxu0 0
    %2234 = vmatpush1.bf16.msra.mxu0 0
    %2235 = vmatprep.mubr.bf16.mxu0 0
    %2236 = vmatmul.mubr.bf16.gmra.mrb[0].mxu0 %v2124
    %v2237 = vpop.f32.mrb[0].mxu0
    %v2238 = vadd.f32 %v2153, %v2237
    %v2239 = vpop.f32.mrb[0].mxu0
    %v2240 = vpop.f32.mrb[0].mxu0
    %v2241 = vadd.f32 %v2153, %v2240
    %v2242 = vpop.f32.mrb[0].mxu0
    %2243 = vmatprep.mubr.bf16.mxu0 0
    %2244 = vmatmul.mubr.bf16.gmra.mrb[0].mxu0 %v2125
    %v2245 = vpop.f32.mrb[0].mxu0
    %v2246 = vadd.f32 %v2153, %v2245
    %v2247 = vpop.f32.mrb[0].mxu0
    %v2248 = vpop.f32.mrb[0].mxu0
    %v2249 = vadd.f32 %v2153, %v2248
    %v2250 = vpop.f32.mrb[0].mxu0
    %2251 = vmatprep.mubr.bf16.mxu0 0
    %2252 = vmatmul.mubr.bf16.gmra.mrb[0].mxu0 %v2126
    %v2253 = vpop.f32.mrb[0].mxu0
    %v2254 = vadd.f32 %v2153, %v2253
    %v2255 = vpop.f32.mrb[0].mxu0
    %v2256 = vpop.f32.mrb[0].mxu0
    %v2257 = vadd.f32 %v2153, %v2256
    %v2258 = vpop.f32.mrb[0].mxu0
    %2259 = vmatprep.mubr.bf16.mxu0 0
    %2260 = vmatmul.mubr.bf16.gmra.mrb[0].mxu0 %v2127
    %v2261 = vpop.f32.mrb[0].mxu0
    %v2262 = vadd.f32 %v2153, %v2261
    %v2263 = vpop.f32.mrb[0].mxu0
    %v2264 = vpop.f32.mrb[0].mxu0
    %v2265 = vadd.f32 %v2153, %v2264
    %v2266 = vpop.f32.mrb[0].mxu0
    %2267 = vmatprep.mubr.bf16.mxu0 0
    %2268 = vmatmul.mubr.bf16.gmra.mrb[0].mxu0 %v2128
    %v2269 = vpop.f32.mrb[0].mxu0
    %v2270 = vadd.f32 %v2153, %v2269
    %v2271 = vpop.f32.mrb[0].mxu0
    %v2272 = vpop.f32.mrb[0].mxu0
    %v2273 = vadd.f32 %v2153, %v2272
    %v2274 = vpop.f32.mrb[0].mxu0
    %2275 = vmatprep.mubr.bf16.mxu0 0
    %2276 = vmatmul.mubr.bf16.gmra.mrb[0].mxu0 %v2129
    %v2277 = vpop.f32.mrb[0].mxu0
    %v2278 = vadd.f32 %v2153, %v2277
    %v2279 = vpop.f32.mrb[0].mxu0
    %v2280 = vpop.f32.mrb[0].mxu0
    %v2281 = vadd.f32 %v2153, %v2280
    %v2282 = vpop.f32.mrb[0].mxu0
    %2283 = vmatprep.mubr.bf16.mxu0 0
    %2284 = vmatmul.mubr.bf16.gmra.mrb[0].mxu0 %v2130
    %v2285 = vpop.f32.mrb[0].mxu0
    %v2286 = vadd.f32 %v2153, %v2285
    %v2287 = vpop.f32.mrb[0].mxu0
    %v2288 = vpop.f32.mrb[0].mxu0
    %v2289 = vadd.f32 %v2153, %v2288
    %v2290 = vpop.f32.mrb[0].mxu0
    %2291 = vmatprep.mubr.bf16.mxu0 0
    %2292 = vmatmul.mubr.bf16.gmra.mrb[0].mxu0 %v2131
    %v2293 = vpop.f32.mrb[0].mxu0
    %v2294 = vadd.f32 %v2153, %v2293
    %v2295 = vpop.f32.mrb[0].mxu0
    %v2296 = vpop.f32.mrb[0].mxu0
    %v2297 = vadd.f32 %v2153, %v2296
    %v2298 = vpop.f32.mrb[0].mxu0
    %2299 = vdwg.mxu0
    %v2300 = vmax.f32 %v2238, 0.0
    %v2301 = vmax.f32 %v2241, 0.0
    %v2302 = vmax.f32 %v2246, 0.0
    %v2303 = vmax.f32 %v2249, 0.0
    %v2304 = vmax.f32 %v2254, 0.0
    %v2305 = vmax.f32 %v2257, 0.0
    %v2306 = vmax.f32 %v2262, 0.0
    %v2307 = vmax.f32 %v2265, 0.0
    %v2308 = vmax.f32 %v2270, 0.0
    %v2309 = vmax.f32 %v2273, 0.0
    %v2310 = vmax.f32 %v2278, 0.0
    %v2311 = vmax.f32 %v2281, 0.0
    %v2312 = vmax.f32 %v2286, 0.0
    %v2313 = vmax.f32 %v2289, 0.0
    %v2314 = vmax.f32 %v2294, 0.0
    %v2315 = vmax.f32 %v2297, 0.0
    %v2316 = vpack.c.bf16 %v2301, %v2300
    %v2317 = vpack.c.bf16 %v2303, %v2302
    %v2318 = vpack.c.bf16 %v2305, %v2304
    %v2319 = vpack.c.bf16 %v2307, %v2306
    %v2320 = vpack.c.bf16 %v2309, %v2308
    %v2321 = vpack.c.bf16 %v2311, %v2310
    %v2322 = vpack.c.bf16 %v2313, %v2312
    %v2323 = vpack.c.bf16 %v2315, %v2314
    %v2324 = vld [vmem:[%s18] sm:$0xf]
    %v2325 = vld [vmem:[%s18 + $0x4] sm:$0xf]
    %v2326 = vld [vmem:[%s18 + $0x8] sm:$0xf]
    %v2327 = vld [vmem:[%s18 + $0xc] sm:$0xf]
    %v2328 = vld [vmem:[%s18 + $0x10] sm:$0xf]
    %v2329 = vld [vmem:[%s18 + $0x14] sm:$0xf]
    %v2330 = vld [vmem:[%s18 + $0x18] sm:$0xf]
    %v2331 = vld [vmem:[%s18 + $0x1c] sm:$0xf]
    %v2332 = vld [vmem:[%s18 + $0x20] sm:$0xf]
    %v2333 = vld [vmem:[%s18 + $0x24] sm:$0xf]
    %v2334 = vld [vmem:[%s18 + $0x28] sm:$0xf]
    %v2335 = vld [vmem:[%s18 + $0x2c] sm:$0xf]
    %v2336 = vld [vmem:[%s18 + $0x30] sm:$0xf]
    %v2337 = vld [vmem:[%s18 + $0x34] sm:$0xf]
    %v2338 = vld [vmem:[%s18 + $0x38] sm:$0xf]
    %v2339 = vld [vmem:[%s18 + $0x3c] sm:$0xf]
    %v2340 = vld [vmem:[%s19] sm:$0x1]
    %v2342 = vlaneseq
    %v2343 = vshrl.u32 %v2342, 7
    %v2344 = vsub.s32 0, %v2343
    %v2345 = vrot.slane %v2340, %v2344
    %v2363 = vunpack.c.l.b16 %v2324
    %v2364 = vunpack.c.l.b16 %v2325
    %v2365 = vunpack.c.l.b16 %v2326
    %v2366 = vunpack.c.l.b16 %v2327
    %v2367 = vunpack.c.l.b16 %v2328
    %v2368 = vunpack.c.l.b16 %v2329
    %v2369 = vunpack.c.l.b16 %v2330
    %v2370 = vunpack.c.l.b16 %v2331
    %v2371 = vunpack.c.l.b16 %v2332
    %v2372 = vunpack.c.l.b16 %v2333
    %v2373 = vunpack.c.l.b16 %v2334
    %v2374 = vunpack.c.l.b16 %v2335
    %v2375 = vunpack.c.l.b16 %v2336
    %v2376 = vunpack.c.l.b16 %v2337
    %v2377 = vunpack.c.l.b16 %v2338
    %v2378 = vunpack.c.l.b16 %v2339
    %v2379 = vpack.c.b16 %v2364, %v2363
    %v2380 = vpack.c.b16 %v2366, %v2365
    %v2381 = vpack.c.b16 %v2368, %v2367
    %v2382 = vpack.c.b16 %v2370, %v2369
    %v2383 = vpack.c.b16 %v2372, %v2371
    %v2384 = vpack.c.b16 %v2374, %v2373
    %v2385 = vpack.c.b16 %v2376, %v2375
    %v2386 = vpack.c.b16 %v2378, %v2377
    %2395 = vmatprep.subr.bf16.mxu0 0
    %2396 = vmatpush1.bf16.msra.mxu0 %v2379
    %2397 = vmatprep.subr.bf16.mxu0 0
    %2398 = vmatpush1.bf16.msra.mxu0 %v2380
    %2399 = vmatprep.subr.bf16.mxu0 0
    %2400 = vmatpush1.bf16.msra.mxu0 %v2381
    %2401 = vmatprep.subr.bf16.mxu0 0
    %2402 = vmatpush1.bf16.msra.mxu0 %v2382
    %2403 = vmatprep.subr.bf16.mxu0 0
    %2404 = vmatpush1.bf16.msra.mxu0 %v2383
    %2405 = vmatprep.subr.bf16.mxu0 0
    %2406 = vmatpush1.bf16.msra.mxu0 %v2384
    %2407 = vmatprep.subr.bf16.mxu0 0
    %2408 = vmatpush1.bf16.msra.mxu0 %v2385
    %2409 = vmatprep.subr.bf16.mxu0 0
    %2410 = vmatpush1.bf16.msra.mxu0 %v2386
    %2411 = vmatprep.subr.bf16.mxu0 0
    %2412 = vmatpush1.bf16.msra.mxu0 0
    %2413 = vmatprep.subr.bf16.mxu0 0
    %2414 = vmatpush1.bf16.msra.mxu0 0
    %2415 = vmatprep.subr.bf16.mxu0 0
    %2416 = vmatpush1.bf16.msra.mxu0 0
    %2417 = vmatprep.subr.bf16.mxu0 0
    %2418 = vmatpush1.bf16.msra.mxu0 0
    %2419 = vmatprep.subr.bf16.mxu0 0
    %2420 = vmatpush1.bf16.msra.mxu0 0
    %2421 = vmatprep.subr.bf16.mxu0 0
    %2422 = vmatpush1.bf16.msra.mxu0 0
    %2423 = vmatprep.subr.bf16.mxu0 0
    %2424 = vmatpush1.bf16.msra.mxu0 0
    %2425 = vmatprep.subr.bf16.mxu0 0
    %2426 = vmatpush1.bf16.msra.mxu0 0
    %2427 = vmatprep.mubr.bf16.mxu0 0
    %2428 = vmatmul.mubr.bf16.gmra.mrb[0].mxu0 %v2316
    %v2429 = vpop.f32.mrb[0].mxu0
    %v2430 = vadd.f32 %v2345, %v2429
    %v2431 = vpop.f32.mrb[0].mxu0
    %v2432 = vpop.f32.mrb[0].mxu0
    %v2433 = vadd.f32 %v2345, %v2432
    %v2434 = vpop.f32.mrb[0].mxu0
    %2435 = vmatprep.mubr.bf16.mxu0 0
    %2436 = vmatmul.mubr.bf16.gmra.mrb[0].mxu0 %v2317
    %v2437 = vpop.f32.mrb[0].mxu0
    %v2438 = vadd.f32 %v2345, %v2437
    %v2439 = vpop.f32.mrb[0].mxu0
    %v2440 = vpop.f32.mrb[0].mxu0
    %v2441 = vadd.f32 %v2345, %v2440
    %v2442 = vpop.f32.mrb[0].mxu0
    %2443 = vmatprep.mubr.bf16.mxu0 0
    %2444 = vmatmul.mubr.bf16.gmra.mrb[0].mxu0 %v2318
    %v2445 = vpop.f32.mrb[0].mxu0
    %v2446 = vadd.f32 %v2345, %v2445
    %v2447 = vpop.f32.mrb[0].mxu0
    %v2448 = vpop.f32.mrb[0].mxu0
    %v2449 = vadd.f32 %v2345, %v2448
    %v2450 = vpop.f32.mrb[0].mxu0
    %2451 = vmatprep.mubr.bf16.mxu0 0
    %2452 = vmatmul.mubr.bf16.gmra.mrb[0].mxu0 %v2319
    %v2453 = vpop.f32.mrb[0].mxu0
    %v2454 = vadd.f32 %v2345, %v2453
    %v2455 = vpop.f32.mrb[0].mxu0
    %v2456 = vpop.f32.mrb[0].mxu0
    %v2457 = vadd.f32 %v2345, %v2456
    %v2458 = vpop.f32.mrb[0].mxu0
    %2459 = vmatprep.mubr.bf16.mxu0 0
    %2460 = vmatmul.mubr.bf16.gmra.mrb[0].mxu0 %v2320
    %v2461 = vpop.f32.mrb[0].mxu0
    %v2462 = vadd.f32 %v2345, %v2461
    %v2463 = vpop.f32.mrb[0].mxu0
    %v2464 = vpop.f32.mrb[0].mxu0
    %v2465 = vadd.f32 %v2345, %v2464
    %v2466 = vpop.f32.mrb[0].mxu0
    %2467 = vmatprep.mubr.bf16.mxu0 0
    %2468 = vmatmul.mubr.bf16.gmra.mrb[0].mxu0 %v2321
    %v2469 = vpop.f32.mrb[0].mxu0
    %v2470 = vadd.f32 %v2345, %v2469
    %v2471 = vpop.f32.mrb[0].mxu0
    %v2472 = vpop.f32.mrb[0].mxu0
    %v2473 = vadd.f32 %v2345, %v2472
    %v2474 = vpop.f32.mrb[0].mxu0
    %2475 = vmatprep.mubr.bf16.mxu0 0
    %2476 = vmatmul.mubr.bf16.gmra.mrb[0].mxu0 %v2322
    %v2477 = vpop.f32.mrb[0].mxu0
    %v2478 = vadd.f32 %v2345, %v2477
    %v2479 = vpop.f32.mrb[0].mxu0
    %v2480 = vpop.f32.mrb[0].mxu0
    %v2481 = vadd.f32 %v2345, %v2480
    %v2482 = vpop.f32.mrb[0].mxu0
    %2483 = vmatprep.mubr.bf16.mxu0 0
    %2484 = vmatmul.mubr.bf16.gmra.mrb[0].mxu0 %v2323
    %v2485 = vpop.f32.mrb[0].mxu0
    %v2486 = vadd.f32 %v2345, %v2485
    %v2487 = vpop.f32.mrb[0].mxu0
    %v2488 = vpop.f32.mrb[0].mxu0
    %v2489 = vadd.f32 %v2345, %v2488
    %v2490 = vpop.f32.mrb[0].mxu0
    %2491 = vdwg.mxu0
    %2492 = vmatprep.subr.mxu0 0.0
    %2493 = vmatpush1.msra.mxu0 %v2430
    %2494 = vmatprep.subr.mxu0 0.0
    %2495 = vmatpush1.msra.mxu0 %v2433
    %2496 = vmatprep.subr.mxu0 0.0
    %2497 = vmatpush1.msra.mxu0 %v2438
    %2498 = vmatprep.subr.mxu0 0.0
    %2499 = vmatpush1.msra.mxu0 %v2441
    %2500 = vmatprep.subr.mxu0 0.0
    %2501 = vmatpush1.msra.mxu0 %v2446
    %2502 = vmatprep.subr.mxu0 0.0
    %2503 = vmatpush1.msra.mxu0 %v2449
    %2504 = vmatprep.subr.mxu0 0.0
    %2505 = vmatpush1.msra.mxu0 %v2454
    %2506 = vmatprep.subr.mxu0 0.0
    %2507 = vmatpush1.msra.mxu0 %v2457
    %2508 = vmatprep.subr.mxu0 0.0
    %2509 = vmatpush1.msra.mxu0 %v2462
    %2510 = vmatprep.subr.mxu0 0.0
    %2511 = vmatpush1.msra.mxu0 %v2465
    %2512 = vmatprep.subr.mxu0 0.0
    %2513 = vmatpush1.msra.mxu0 %v2470
    %2514 = vmatprep.subr.mxu0 0.0
    %2515 = vmatpush1.msra.mxu0 %v2473
    %2516 = vmatprep.subr.mxu0 0.0
    %2517 = vmatpush1.msra.mxu0 %v2478
    %2518 = vmatprep.subr.mxu0 0.0
    %2519 = vmatpush1.msra.mxu0 %v2481
    %2520 = vmatprep.subr.mxu0 0.0
    %2521 = vmatpush1.msra.mxu0 %v2486
    %2522 = vmatprep.subr.mxu0 0.0
    %2523 = vmatpush1.msra.mxu0 %v2489
    %2524 = vmatprep.subr.mxu0 0.0
    %2525 = vmatpush1.msra.mxu0 0.0
    %2526 = vmatprep.subr.mxu0 0.0
    %2527 = vmatpush1.msra.mxu0 0.0
    %2528 = vmatprep.subr.mxu0 0.0
    %2529 = vmatpush1.msra.mxu0 0.0
    %2530 = vmatprep.subr.mxu0 0.0
    %2531 = vmatpush1.msra.mxu0 0.0
    %2532 = vmatprep.subr.mxu0 0.0
    %2533 = vmatpush1.msra.mxu0 0.0
    %2534 = vmatprep.subr.mxu0 0.0
    %2535 = vmatpush1.msra.mxu0 0.0
    %2536 = vmatprep.subr.mxu0 0.0
    %2537 = vmatpush1.msra.mxu0 0.0
    %2538 = vmatprep.subr.mxu0 0.0
    %2539 = vmatpush1.msra.mxu0 0.0
    %2540 = vmatprep.subr.mxu0 0.0
    %2541 = vmatpush1.msra.mxu0 0.0
    %2542 = vmatprep.subr.mxu0 0.0
    %2543 = vmatpush1.msra.mxu0 0.0
    %2544 = vmatprep.subr.mxu0 0.0
    %2545 = vmatpush1.msra.mxu0 0.0
    %2546 = vmatprep.subr.mxu0 0.0
    %2547 = vmatpush1.msra.mxu0 0.0
    %2548 = vmatprep.subr.mxu0 0.0
    %2549 = vmatpush1.msra.mxu0 0.0
    %2550 = vmatprep.subr.mxu0 0.0
    %2551 = vmatpush1.msra.mxu0 0.0
    %2552 = vmatprep.subr.mxu0 0.0
    %2553 = vmatpush1.msra.mxu0 0.0
    %2554 = vmatprep.subr.mxu0 0.0
    %2555 = vmatpush1.msra.mxu0 0.0
    %2556 = vmatprep.mubr.f32.mxu0 0.0
    %2557 = vmatmul.mubr.f32.gmra.mrb[0].mxu0 %v316
    %v2558 = vpop.f32.mrb[0].mxu0
    %v2559 = vadd.f32 0.0, %v2558
    %v2560 = vpop.f32.mrb[0].mxu0
    %2561 = vdwg.mxu0
    %2562 = vst [vmem:[#allocation29 + $0x8] sm:$0xf] %v2559
    // Predicated region
    $region158: #{tpu_custom_call.1} parent=1 // pred_check
      _
    $region159: #{tpu_custom_call.1} parent=1 // pred_check_branch
      %2564 = sbr.rel (0) target = $region161
    $region160: #{tpu_custom_call.1} parent=1 // pred_region
      %s2566 = ssub.s32 192, 192
      %2567 = vsyncadd [#allocation4], %s2566
      %s2569 = sshll.u32 [#allocation29], 4
      %s2570 = int_to_ptr.vmem [resolvable:$true] %s2569
      %2572 = dma.vmem_to_hbm [thread:$0]  %s2570, 192, %s22, [#allocation4]
    $region161: #{tpu_custom_call.1} parent=1 // pred_fallthru
      _
    // Predicated region
    $region162: #{tpu_custom_call.1} parent=1 // pred_check
      _
    $region163: #{tpu_custom_call.1} parent=1 // pred_check_branch
      %2574 = sbr.rel (0) target = $region165
    $region164: #{tpu_custom_call.1} parent=1 // pred_region
      %2575 = dma.done [#allocation4], 192
    $region165: #{tpu_custom_call.1} parent=1 // pred_fallthru
      _
    %2576 = vsyncpa [#allocation3], 1
    %2577 = vsyncpa [#allocation6], 1
    %2578 = vsyncpa [#allocation9], 1
    %2579 = vsyncpa [#allocation12], 1
    %2580 = vsyncpa [#allocation15], 1
    %2581 = vsyncpa [#allocation18], 1
    %2582 = vsyncpa [#allocation21], 1
    %2583 = vsyncpa [#allocation24], 1
    %2584 = vsyncpa [#allocation27], 1
    %2585 = vsyncpa [#allocation4], 1

</llo_original>
